<compile_context>
chip_gen: v6e
topology: v6e:2x2x1
jax: 0.10.0
libtpu: 0.0.40
codegen_flags: <defaults>
</compile_context>

<pallas_src>
import math
from functools import partial

import jax
import jax.numpy as jnp
from jax import lax
from jax.experimental import pallas as pl
from jax.experimental.pallas import tpu as pltpu


# ----------------------------- kernel math -----------------------------------

def _layer_norm(x, g, b, eps=1e-5):
    mu = jnp.mean(x, axis=-1, keepdims=True)
    var = jnp.mean((x - mu) ** 2, axis=-1, keepdims=True)  # biased, like torch
    return (x - mu) * lax.rsqrt(var + eps) * g + b


def encoder_layer_kernel(
    x_ref, mm_ref,
    wq_ref, bq_ref, wo_ref, bo_ref,
    w1_ref, b1_ref, w2_ref, b2_ref,
    g1_ref, be1_ref, g2_ref, be2_ref,
    out_ref, *, heads, d_k):
    Bt, L, D = x_ref.shape
    x3 = x_ref[...]                       # (Bt, L, D), boundary dtype
    keep = mm_ref[...] > 0.5              # (Bt, 1, L): True where key position observed
    x2 = x3.reshape(Bt * L, D)            # fold batch into the matmul M dimension

    # --- shared Q/K/V projection (W_q applied to q == k == v): ONE matmul ---
    qkv = jnp.dot(x2, wq_ref[...], preferred_element_type=jnp.float32) + bq_ref[...]
    qkv3 = qkv.reshape(Bt, L, heads * d_k)          # f32

    scale = jnp.float32(1.0 / math.sqrt(L))         # torch: / np.sqrt(sequence_length)
    neg = jnp.float32(-jnp.inf)                     # matches masked_fill(-inf)
    # NOTE: a fully-masked key row would produce NaN, same as the torch module.

    # --- attention: per-head softmax (batched over Bt), output projection
    #     accumulated per head -> no concatenate, no extra lane shuffles ---
    acc = jnp.zeros((Bt * L, D), jnp.float32)
    for h in range(heads):                           # static unroll over heads
        qh = qkv3[:, :, h * d_k:(h + 1) * d_k]       # (Bt, L, d_k) == K_h == V_h
        s = jnp.einsum('bqd,bkd->bqk', qh * scale, qh,
                       preferred_element_type=jnp.float32)
        s = jnp.where(keep, s, neg)                  # single select (key mask only)
        m = jnp.max(s, axis=-1, keepdims=True)
        p = jnp.exp(s - m)
        p = p * pl.reciprocal(jnp.sum(p, axis=-1, keepdims=True), approx=True)
        pv = jnp.einsum('bqk,bkd->bqd', p, qh,
                        preferred_element_type=jnp.float32)   # (Bt, L, d_k)
        acc = acc + jnp.dot(pv.reshape(Bt * L, d_k).astype(wo_ref.dtype),
                            wo_ref[h], preferred_element_type=jnp.float32)

    att = acc + bo_ref[...]

    # --- Add & Norm 1 (dropout == identity in eval) ---
    y = _layer_norm(att + x2, g1_ref[...], be1_ref[...])       # f32, (Bt*L, D)

    # --- position-wise feed-forward ---
    hdn = jnp.maximum(
        jnp.dot(y.astype(w1_ref.dtype), w1_ref[...],
                preferred_element_type=jnp.float32) + b1_ref[...], 0.0)
    f = jnp.dot(hdn.astype(w2_ref.dtype), w2_ref[...],
                preferred_element_type=jnp.float32) + b2_ref[...]

    # --- Add & Norm 2 ---
    out = _layer_norm(f + y, g2_ref[...], be2_ref[...])

    out_ref[...] = out.reshape(Bt, L, D).astype(out_ref.dtype)


# ------------------------------- wrapper --------------------------------------

def encoder_layer(x, missing_mask, params, *, heads, d_k,
                  batch_block=None, dtype=jnp.float32):
    B, L, D = x.shape
    bt = B if batch_block is None else batch_block
    assert B % bt == 0, "batch_block must divide batch"
    mm = missing_mask.reshape(B, 1, L).astype(jnp.float32)

    def row(v):  # 1-D params -> (1, N) for TPU-friendly 2-D layout
        return v.reshape(1, -1).astype(dtype)

    wq_t = params["sa_wq"].T.astype(dtype)                        # (D, H*dk)
    wo3 = params["sa_wo"].T.reshape(heads, d_k, D).astype(dtype)  # (H, dk, D)

    args = [
        x.astype(dtype), mm,
        wq_t, row(params["sa_bq"]),
        wo3, row(params["sa_bo"]),
        params["ff_w1"].T.astype(dtype), row(params["ff_b1"]),
        params["ff_w2"].T.astype(dtype), row(params["ff_b2"]),
        row(params["ln1_g"]), row(params["ln1_b"]),
        row(params["ln2_g"]), row(params["ln2_b"]),
    ]

    def batch_spec(shape):
        nrest = len(shape) - 1
        return pl.BlockSpec((bt,) + tuple(shape[1:]),
                            lambda b, _n=nrest: (b,) + (0,) * _n)

    def full_spec(shape):
        nd = len(shape)
        return pl.BlockSpec(tuple(shape), lambda b, _n=nd: (0,) * _n)

    in_specs = [batch_spec(x.shape), batch_spec(mm.shape)]
    in_specs += [full_spec(a.shape) for a in args[2:]]

    kernel = partial(encoder_layer_kernel, heads=heads, d_k=d_k)
    return pl.pallas_call(
        kernel,
        out_shape=jax.ShapeDtypeStruct((B, L, D), jnp.float32),
        grid_spec=pltpu.PrefetchScalarGridSpec(
            num_scalar_prefetch=0,
            grid=(B // bt,),
            in_specs=in_specs,
            out_specs=batch_spec((B, L, D)),
        ),
        compiler_params=pltpu.CompilerParams(
            dimension_semantics=("parallel",)),
    )(*args)


# ------------------------- params + pure-JAX reference ------------------------

def init_params(key, d_model, d_hidden, d_k, d_v, heads):
    assert d_k == d_v, "module's forward requires d_k == d_v (W_o input width)"
    ks = jax.random.split(key, 4)

    def linear(k, out_dim, in_dim):
        bound = 1.0 / math.sqrt(in_dim)
        kw, kb = jax.random.split(k)
        w = jax.random.uniform(kw, (out_dim, in_dim), jnp.float32, -bound, bound)
        b = jax.random.uniform(kb, (out_dim,), jnp.float32, -bound, bound)
        return w, b

    sa_wq, sa_bq = linear(ks[0], heads * d_k, d_model)
    sa_wo, sa_bo = linear(ks[1], d_model, heads * d_v)
    ff_w1, ff_b1 = linear(ks[2], d_hidden, d_model)
    ff_w2, ff_b2 = linear(ks[3], d_model, d_hidden)
    # NOTE: the torch module also creates W_k / W_v, but forward never uses them.
    return dict(
        sa_wq=sa_wq, sa_bq=sa_bq, sa_wo=sa_wo, sa_bo=sa_bo,
        ff_w1=ff_w1, ff_b1=ff_b1, ff_w2=ff_w2, ff_b2=ff_b2,
        ln1_g=jnp.ones((d_model,), jnp.float32), ln1_b=jnp.zeros((d_model,), jnp.float32),
        ln2_g=jnp.ones((d_model,), jnp.float32), ln2_b=jnp.zeros((d_model,), jnp.float32),
    )


def encoder_layer_ref(x, missing_mask, params, *, heads, d_k):
    B, L, D = x.shape
    keep = missing_mask.reshape(B, 1, L) > 0.5
    qkv = x @ params["sa_wq"].T + params["sa_bq"]     # W_q used for q, k and v
    scale = 1.0 / math.sqrt(L)
    outs = []
    for h in range(heads):
        qh = qkv[..., h * d_k:(h + 1) * d_k]
        s = jnp.einsum('bqd,bkd->bqk', qh, qh) * scale
        s = jnp.where(keep, s, -jnp.inf)
        p = jax.nn.softmax(s, axis=-1)
        outs.append(jnp.einsum('bqk,bkd->bqd', p, qh))
    att = jnp.concatenate(outs, axis=-1) @ params["sa_wo"].T + params["sa_bo"]
    y = _layer_norm(att + x, params["ln1_g"], params["ln1_b"])
    f = jnp.maximum(y @ params["ff_w1"].T + params["ff_b1"], 0.0)
    f = f @ params["ff_w2"].T + params["ff_b2"]
    return _layer_norm(f + y, params["ln2_g"], params["ln2_b"])


# --------------------------------- main ---------------------------------------

if __name__ == "__main__":
    B, L = 2, 8
    d_model, d_hidden, d_k, d_v, heads = 32, 64, 8, 8, 4

    key = jax.random.PRNGKey(0)
    kx, kp = jax.random.split(key)
    x = jax.random.normal(kx, (B, L, d_model), jnp.float32)
    # missing_mask: 1 = observed key position, 0 = missing (masked out).
    missing_mask = jnp.ones((B, L, 1), jnp.float32)
    missing_mask = missing_mask.at[0, 5, 0].set(0.0).at[1, 3, 0].set(0.0)

    params = init_params(kp, d_model, d_hidden, d_k, d_v, heads)

    out = encoder_layer(x, missing_mask, params, heads=heads, d_k=d_k)
    out = jax.block_until_ready(out)

    ref = encoder_layer_ref(x, missing_mask, params, heads=heads, d_k=d_k)
    assert out.shape == (B, L, d_model)
    assert bool(jnp.isfinite(out).all())
    # tolerance covers the approx-reciprocal softmax normalization
    assert bool(jnp.allclose(out, ref, rtol=1e-2, atol=1e-2))
    print("KERNEL_OK")
</pallas_src>

<mosaic_0001>
module attributes {stable_mosaic.version = 11 : i64} {
  func.func @encoder_layer_kernel(%arg0: i32, %arg1: memref<2x8x32xf32, #tpu.memory_space<vmem>>, %arg2: memref<2x1x8xf32, #tpu.memory_space<vmem>>, %arg3: memref<32x32xf32, #tpu.memory_space<vmem>>, %arg4: memref<1x32xf32, #tpu.memory_space<vmem>>, %arg5: memref<4x8x32xf32, #tpu.memory_space<vmem>>, %arg6: memref<1x32xf32, #tpu.memory_space<vmem>>, %arg7: memref<32x64xf32, #tpu.memory_space<vmem>>, %arg8: memref<1x64xf32, #tpu.memory_space<vmem>>, %arg9: memref<64x32xf32, #tpu.memory_space<vmem>>, %arg10: memref<1x32xf32, #tpu.memory_space<vmem>>, %arg11: memref<1x32xf32, #tpu.memory_space<vmem>>, %arg12: memref<1x32xf32, #tpu.memory_space<vmem>>, %arg13: memref<1x32xf32, #tpu.memory_space<vmem>>, %arg14: memref<1x32xf32, #tpu.memory_space<vmem>>, %arg15: memref<2x8x32xf32, #tpu.memory_space<vmem>>) attributes {dimension_semantics = [#tpu.dimension_semantics<parallel>], iteration_bounds = array<i64: 1>, scalar_prefetch = 0 : i64, scratch_operands = 0 : i64, tpu.core_type = #tpu.core_type<tc>, window_params = [{transform_indices = @transform_0, window_bounds = array<i64: 2, 8, 32>}, {transform_indices = @transform_1, window_bounds = array<i64: 2, 1, 8>}, {pipeline_mode = #tpu.pipeline_mode<synchronous>, transform_indices = @transform_2, window_bounds = array<i64: 32, 32>}, {pipeline_mode = #tpu.pipeline_mode<synchronous>, transform_indices = @transform_3, window_bounds = array<i64: 1, 32>}, {pipeline_mode = #tpu.pipeline_mode<synchronous>, transform_indices = @transform_4, window_bounds = array<i64: 4, 8, 32>}, {pipeline_mode = #tpu.pipeline_mode<synchronous>, transform_indices = @transform_5, window_bounds = array<i64: 1, 32>}, {pipeline_mode = #tpu.pipeline_mode<synchronous>, transform_indices = @transform_6, window_bounds = array<i64: 32, 64>}, {pipeline_mode = #tpu.pipeline_mode<synchronous>, transform_indices = @transform_7, window_bounds = array<i64: 1, 64>}, {pipeline_mode = #tpu.pipeline_mode<synchronous>, transform_indices = @transform_8, window_bounds = array<i64: 64, 32>}, {pipeline_mode = #tpu.pipeline_mode<synchronous>, transform_indices = @transform_9, window_bounds = array<i64: 1, 32>}, {pipeline_mode = #tpu.pipeline_mode<synchronous>, transform_indices = @transform_10, window_bounds = array<i64: 1, 32>}, {pipeline_mode = #tpu.pipeline_mode<synchronous>, transform_indices = @transform_11, window_bounds = array<i64: 1, 32>}, {pipeline_mode = #tpu.pipeline_mode<synchronous>, transform_indices = @transform_12, window_bounds = array<i64: 1, 32>}, {pipeline_mode = #tpu.pipeline_mode<synchronous>, transform_indices = @transform_13, window_bounds = array<i64: 1, 32>}, {transform_indices = @transform_14, window_bounds = array<i64: 2, 8, 32>}]} {
    %c0 = arith.constant 0 : index
    %c0_0 = arith.constant 0 : index
    %c0_1 = arith.constant 0 : index
    %0 = vector.load %arg1[%c0, %c0_0, %c0_1] : memref<2x8x32xf32, #tpu.memory_space<vmem>>, vector<2x8x32xf32>
    %c0_2 = arith.constant 0 : index
    %c0_3 = arith.constant 0 : index
    %c0_4 = arith.constant 0 : index
    %1 = vector.load %arg2[%c0_2, %c0_3, %c0_4] : memref<2x1x8xf32, #tpu.memory_space<vmem>>, vector<2x1x8xf32>
    %cst = arith.constant 5.000000e-01 : f32
    %2 = vector.broadcast %cst : f32 to vector<2x1x8xf32>
    %3 = arith.cmpf ogt, %1, %2 : vector<2x1x8xf32>
    %4 = vector.shape_cast %0 : vector<2x8x32xf32> to vector<16x32xf32>
    %c0_5 = arith.constant 0 : index
    %c0_6 = arith.constant 0 : index
    %5 = vector.load %arg3[%c0_5, %c0_6] : memref<32x32xf32, #tpu.memory_space<vmem>>, vector<32x32xf32>
    %cst_7 = arith.constant dense<0.000000e+00> : vector<16x32xf32>
    %6 = tpu.matmul %4, %5, %cst_7 {dimension_numbers = #tpu.dot_dimension_numbers<[1], [0], [0], [1], [0, 0, 1, 1], [], []>} : vector<16x32xf32>, vector<32x32xf32>, vector<16x32xf32> -> vector<16x32xf32>
    %c0_8 = arith.constant 0 : index
    %c0_9 = arith.constant 0 : index
    %7 = vector.load %arg4[%c0_8, %c0_9] : memref<1x32xf32, #tpu.memory_space<vmem>>, vector<1x32xf32>
    %8 = vector.broadcast %7 : vector<1x32xf32> to vector<16x32xf32>
    %9 = arith.addf %6, %8 : vector<16x32xf32>
    %10 = vector.shape_cast %9 : vector<16x32xf32> to vector<2x8x32xf32>
    %cst_10 = arith.constant 0.000000e+00 : f32
    %11 = vector.broadcast %cst_10 : f32 to vector<16x32xf32>
    %12 = vector.extract_strided_slice %10 {offsets = [0, 0, 0], sizes = [2, 8, 8], strides = [1, 1, 1]} : vector<2x8x32xf32> to vector<2x8x8xf32>
    %cst_11 = arith.constant 0.353553385 : f32
    %13 = vector.broadcast %cst_11 : f32 to vector<2x8x8xf32>
    %14 = arith.mulf %12, %13 : vector<2x8x8xf32>
    "tpu.trace_start"() <{level = 10 : i32, message = "bqd,bkd->bqk"}> : () -> ()
    %cst_12 = arith.constant dense<0.000000e+00> : vector<2x8x8xf32>
    %15 = tpu.matmul %14, %12, %cst_12 {dimension_numbers = #tpu.dot_dimension_numbers<[2], [2], [1], [1], [0, 0, 0, 1, 1, 1], [0], [0]>} : vector<2x8x8xf32>, vector<2x8x8xf32>, vector<2x8x8xf32> -> vector<2x8x8xf32>
    %cst_13 = arith.constant 0xFF800000 : f32
    "tpu.trace_stop"() : () -> ()
    %16 = vector.shape_cast %3 : vector<2x1x8xi1> to vector<2x1x8xi1>
    %17 = vector.broadcast %16 : vector<2x1x8xi1> to vector<2x8x8xi1>
    %18 = vector.broadcast %cst_13 : f32 to vector<2x8x8xf32>
    %19 = arith.select %17, %15, %18 : vector<2x8x8xi1>, vector<2x8x8xf32>
    %cst_14 = arith.constant dense<0xFF800000> : vector<2x8xf32>
    %20 = vector.multi_reduction <maximumf>, %19, %cst_14 [2] : vector<2x8x8xf32> to vector<2x8xf32>
    %21 = vector.shape_cast %20 : vector<2x8xf32> to vector<2x8x1xf32>
    %22 = vector.broadcast %21 : vector<2x8x1xf32> to vector<2x8x8xf32>
    %23 = arith.subf %19, %22 : vector<2x8x8xf32>
    %24 = math.exp %23 : vector<2x8x8xf32>
    %cst_15 = arith.constant dense<0.000000e+00> : vector<2x8xf32>
    %25 = vector.multi_reduction <add>, %24, %cst_15 [2] : vector<2x8x8xf32> to vector<2x8xf32>
    %26 = vector.shape_cast %25 : vector<2x8xf32> to vector<2x8x1xf32>
    %27 = tpu.reciprocal %26 {approx = true} : vector<2x8x1xf32> -> vector<2x8x1xf32>
    %28 = vector.broadcast %27 : vector<2x8x1xf32> to vector<2x8x8xf32>
    %29 = arith.mulf %24, %28 : vector<2x8x8xf32>
    "tpu.trace_start"() <{level = 10 : i32, message = "bqk,bkd->bqd"}> : () -> ()
    %cst_16 = arith.constant dense<0.000000e+00> : vector<2x8x8xf32>
    %30 = tpu.matmul %29, %12, %cst_16 {dimension_numbers = #tpu.dot_dimension_numbers<[2], [1], [1], [2], [0, 0, 0, 1, 1, 2], [0], [0]>} : vector<2x8x8xf32>, vector<2x8x8xf32>, vector<2x8x8xf32> -> vector<2x8x8xf32>
    "tpu.trace_stop"() : () -> ()
    %31 = vector.shape_cast %30 : vector<2x8x8xf32> to vector<16x8xf32>
    %c0_17 = arith.constant 0 : index
    %c0_18 = arith.constant 0 : index
    %c0_19 = arith.constant 0 : index
    %32 = vector.load %arg5[%c0_17, %c0_18, %c0_19] : memref<4x8x32xf32, #tpu.memory_space<vmem>>, vector<1x8x32xf32>
    %33 = vector.shape_cast %32 : vector<1x8x32xf32> to vector<8x32xf32>
    %cst_20 = arith.constant dense<0.000000e+00> : vector<16x32xf32>
    %34 = tpu.matmul %31, %33, %cst_20 {dimension_numbers = #tpu.dot_dimension_numbers<[1], [0], [0], [1], [0, 0, 1, 1], [], []>} : vector<16x8xf32>, vector<8x32xf32>, vector<16x32xf32> -> vector<16x32xf32>
    %35 = arith.addf %11, %34 : vector<16x32xf32>
    %36 = vector.extract_strided_slice %10 {offsets = [0, 0, 8], sizes = [2, 8, 8], strides = [1, 1, 1]} : vector<2x8x32xf32> to vector<2x8x8xf32>
    %cst_21 = arith.constant 0.353553385 : f32
    %37 = vector.broadcast %cst_21 : f32 to vector<2x8x8xf32>
    %38 = arith.mulf %36, %37 : vector<2x8x8xf32>
    "tpu.trace_start"() <{level = 10 : i32, message = "bqd,bkd->bqk"}> : () -> ()
    %cst_22 = arith.constant dense<0.000000e+00> : vector<2x8x8xf32>
    %39 = tpu.matmul %38, %36, %cst_22 {dimension_numbers = #tpu.dot_dimension_numbers<[2], [2], [1], [1], [0, 0, 0, 1, 1, 1], [0], [0]>} : vector<2x8x8xf32>, vector<2x8x8xf32>, vector<2x8x8xf32> -> vector<2x8x8xf32>
    %cst_23 = arith.constant 0xFF800000 : f32
    "tpu.trace_stop"() : () -> ()
    %40 = vector.shape_cast %3 : vector<2x1x8xi1> to vector<2x1x8xi1>
    %41 = vector.broadcast %40 : vector<2x1x8xi1> to vector<2x8x8xi1>
    %42 = vector.broadcast %cst_23 : f32 to vector<2x8x8xf32>
    %43 = arith.select %41, %39, %42 : vector<2x8x8xi1>, vector<2x8x8xf32>
    %cst_24 = arith.constant dense<0xFF800000> : vector<2x8xf32>
    %44 = vector.multi_reduction <maximumf>, %43, %cst_24 [2] : vector<2x8x8xf32> to vector<2x8xf32>
    %45 = vector.shape_cast %44 : vector<2x8xf32> to vector<2x8x1xf32>
    %46 = vector.broadcast %45 : vector<2x8x1xf32> to vector<2x8x8xf32>
    %47 = arith.subf %43, %46 : vector<2x8x8xf32>
    %48 = math.exp %47 : vector<2x8x8xf32>
    %cst_25 = arith.constant dense<0.000000e+00> : vector<2x8xf32>
    %49 = vector.multi_reduction <add>, %48, %cst_25 [2] : vector<2x8x8xf32> to vector<2x8xf32>
    %50 = vector.shape_cast %49 : vector<2x8xf32> to vector<2x8x1xf32>
    %51 = tpu.reciprocal %50 {approx = true} : vector<2x8x1xf32> -> vector<2x8x1xf32>
    %52 = vector.broadcast %51 : vector<2x8x1xf32> to vector<2x8x8xf32>
    %53 = arith.mulf %48, %52 : vector<2x8x8xf32>
    "tpu.trace_start"() <{level = 10 : i32, message = "bqk,bkd->bqd"}> : () -> ()
    %cst_26 = arith.constant dense<0.000000e+00> : vector<2x8x8xf32>
    %54 = tpu.matmul %53, %36, %cst_26 {dimension_numbers = #tpu.dot_dimension_numbers<[2], [1], [1], [2], [0, 0, 0, 1, 1, 2], [0], [0]>} : vector<2x8x8xf32>, vector<2x8x8xf32>, vector<2x8x8xf32> -> vector<2x8x8xf32>
    "tpu.trace_stop"() : () -> ()
    %55 = vector.shape_cast %54 : vector<2x8x8xf32> to vector<16x8xf32>
    %c1 = arith.constant 1 : index
    %c0_27 = arith.constant 0 : index
    %c0_28 = arith.constant 0 : index
    %56 = vector.load %arg5[%c1, %c0_27, %c0_28] : memref<4x8x32xf32, #tpu.memory_space<vmem>>, vector<1x8x32xf32>
    %57 = vector.shape_cast %56 : vector<1x8x32xf32> to vector<8x32xf32>
    %cst_29 = arith.constant dense<0.000000e+00> : vector<16x32xf32>
    %58 = tpu.matmul %55, %57, %cst_29 {dimension_numbers = #tpu.dot_dimension_numbers<[1], [0], [0], [1], [0, 0, 1, 1], [], []>} : vector<16x8xf32>, vector<8x32xf32>, vector<16x32xf32> -> vector<16x32xf32>
    %59 = arith.addf %35, %58 : vector<16x32xf32>
    %60 = vector.extract_strided_slice %10 {offsets = [0, 0, 16], sizes = [2, 8, 8], strides = [1, 1, 1]} : vector<2x8x32xf32> to vector<2x8x8xf32>
    %cst_30 = arith.constant 0.353553385 : f32
    %61 = vector.broadcast %cst_30 : f32 to vector<2x8x8xf32>
    %62 = arith.mulf %60, %61 : vector<2x8x8xf32>
    "tpu.trace_start"() <{level = 10 : i32, message = "bqd,bkd->bqk"}> : () -> ()
    %cst_31 = arith.constant dense<0.000000e+00> : vector<2x8x8xf32>
    %63 = tpu.matmul %62, %60, %cst_31 {dimension_numbers = #tpu.dot_dimension_numbers<[2], [2], [1], [1], [0, 0, 0, 1, 1, 1], [0], [0]>} : vector<2x8x8xf32>, vector<2x8x8xf32>, vector<2x8x8xf32> -> vector<2x8x8xf32>
    %cst_32 = arith.constant 0xFF800000 : f32
    "tpu.trace_stop"() : () -> ()
    %64 = vector.shape_cast %3 : vector<2x1x8xi1> to vector<2x1x8xi1>
    %65 = vector.broadcast %64 : vector<2x1x8xi1> to vector<2x8x8xi1>
    %66 = vector.broadcast %cst_32 : f32 to vector<2x8x8xf32>
    %67 = arith.select %65, %63, %66 : vector<2x8x8xi1>, vector<2x8x8xf32>
    %cst_33 = arith.constant dense<0xFF800000> : vector<2x8xf32>
    %68 = vector.multi_reduction <maximumf>, %67, %cst_33 [2] : vector<2x8x8xf32> to vector<2x8xf32>
    %69 = vector.shape_cast %68 : vector<2x8xf32> to vector<2x8x1xf32>
    %70 = vector.broadcast %69 : vector<2x8x1xf32> to vector<2x8x8xf32>
    %71 = arith.subf %67, %70 : vector<2x8x8xf32>
    %72 = math.exp %71 : vector<2x8x8xf32>
    %cst_34 = arith.constant dense<0.000000e+00> : vector<2x8xf32>
    %73 = vector.multi_reduction <add>, %72, %cst_34 [2] : vector<2x8x8xf32> to vector<2x8xf32>
    %74 = vector.shape_cast %73 : vector<2x8xf32> to vector<2x8x1xf32>
    %75 = tpu.reciprocal %74 {approx = true} : vector<2x8x1xf32> -> vector<2x8x1xf32>
    %76 = vector.broadcast %75 : vector<2x8x1xf32> to vector<2x8x8xf32>
    %77 = arith.mulf %72, %76 : vector<2x8x8xf32>
    "tpu.trace_start"() <{level = 10 : i32, message = "bqk,bkd->bqd"}> : () -> ()
    %cst_35 = arith.constant dense<0.000000e+00> : vector<2x8x8xf32>
    %78 = tpu.matmul %77, %60, %cst_35 {dimension_numbers = #tpu.dot_dimension_numbers<[2], [1], [1], [2], [0, 0, 0, 1, 1, 2], [0], [0]>} : vector<2x8x8xf32>, vector<2x8x8xf32>, vector<2x8x8xf32> -> vector<2x8x8xf32>
    "tpu.trace_stop"() : () -> ()
    %79 = vector.shape_cast %78 : vector<2x8x8xf32> to vector<16x8xf32>
    %c2 = arith.constant 2 : index
    %c0_36 = arith.constant 0 : index
    %c0_37 = arith.constant 0 : index
    %80 = vector.load %arg5[%c2, %c0_36, %c0_37] : memref<4x8x32xf32, #tpu.memory_space<vmem>>, vector<1x8x32xf32>
    %81 = vector.shape_cast %80 : vector<1x8x32xf32> to vector<8x32xf32>
    %cst_38 = arith.constant dense<0.000000e+00> : vector<16x32xf32>
    %82 = tpu.matmul %79, %81, %cst_38 {dimension_numbers = #tpu.dot_dimension_numbers<[1], [0], [0], [1], [0, 0, 1, 1], [], []>} : vector<16x8xf32>, vector<8x32xf32>, vector<16x32xf32> -> vector<16x32xf32>
    %83 = arith.addf %59, %82 : vector<16x32xf32>
    %84 = vector.extract_strided_slice %10 {offsets = [0, 0, 24], sizes = [2, 8, 8], strides = [1, 1, 1]} : vector<2x8x32xf32> to vector<2x8x8xf32>
    %cst_39 = arith.constant 0.353553385 : f32
    %85 = vector.broadcast %cst_39 : f32 to vector<2x8x8xf32>
    %86 = arith.mulf %84, %85 : vector<2x8x8xf32>
    "tpu.trace_start"() <{level = 10 : i32, message = "bqd,bkd->bqk"}> : () -> ()
    %cst_40 = arith.constant dense<0.000000e+00> : vector<2x8x8xf32>
    %87 = tpu.matmul %86, %84, %cst_40 {dimension_numbers = #tpu.dot_dimension_numbers<[2], [2], [1], [1], [0, 0, 0, 1, 1, 1], [0], [0]>} : vector<2x8x8xf32>, vector<2x8x8xf32>, vector<2x8x8xf32> -> vector<2x8x8xf32>
    %cst_41 = arith.constant 0xFF800000 : f32
    "tpu.trace_stop"() : () -> ()
    %88 = vector.shape_cast %3 : vector<2x1x8xi1> to vector<2x1x8xi1>
    %89 = vector.broadcast %88 : vector<2x1x8xi1> to vector<2x8x8xi1>
    %90 = vector.broadcast %cst_41 : f32 to vector<2x8x8xf32>
    %91 = arith.select %89, %87, %90 : vector<2x8x8xi1>, vector<2x8x8xf32>
    %cst_42 = arith.constant dense<0xFF800000> : vector<2x8xf32>
    %92 = vector.multi_reduction <maximumf>, %91, %cst_42 [2] : vector<2x8x8xf32> to vector<2x8xf32>
    %93 = vector.shape_cast %92 : vector<2x8xf32> to vector<2x8x1xf32>
    %94 = vector.broadcast %93 : vector<2x8x1xf32> to vector<2x8x8xf32>
    %95 = arith.subf %91, %94 : vector<2x8x8xf32>
    %96 = math.exp %95 : vector<2x8x8xf32>
    %cst_43 = arith.constant dense<0.000000e+00> : vector<2x8xf32>
    %97 = vector.multi_reduction <add>, %96, %cst_43 [2] : vector<2x8x8xf32> to vector<2x8xf32>
    %98 = vector.shape_cast %97 : vector<2x8xf32> to vector<2x8x1xf32>
    %99 = tpu.reciprocal %98 {approx = true} : vector<2x8x1xf32> -> vector<2x8x1xf32>
    %100 = vector.broadcast %99 : vector<2x8x1xf32> to vector<2x8x8xf32>
    %101 = arith.mulf %96, %100 : vector<2x8x8xf32>
    "tpu.trace_start"() <{level = 10 : i32, message = "bqk,bkd->bqd"}> : () -> ()
    %cst_44 = arith.constant dense<0.000000e+00> : vector<2x8x8xf32>
    %102 = tpu.matmul %101, %84, %cst_44 {dimension_numbers = #tpu.dot_dimension_numbers<[2], [1], [1], [2], [0, 0, 0, 1, 1, 2], [0], [0]>} : vector<2x8x8xf32>, vector<2x8x8xf32>, vector<2x8x8xf32> -> vector<2x8x8xf32>
    "tpu.trace_stop"() : () -> ()
    %103 = vector.shape_cast %102 : vector<2x8x8xf32> to vector<16x8xf32>
    %c3 = arith.constant 3 : index
    %c0_45 = arith.constant 0 : index
    %c0_46 = arith.constant 0 : index
    %104 = vector.load %arg5[%c3, %c0_45, %c0_46] : memref<4x8x32xf32, #tpu.memory_space<vmem>>, vector<1x8x32xf32>
    %105 = vector.shape_cast %104 : vector<1x8x32xf32> to vector<8x32xf32>
    %cst_47 = arith.constant dense<0.000000e+00> : vector<16x32xf32>
    %106 = tpu.matmul %103, %105, %cst_47 {dimension_numbers = #tpu.dot_dimension_numbers<[1], [0], [0], [1], [0, 0, 1, 1], [], []>} : vector<16x8xf32>, vector<8x32xf32>, vector<16x32xf32> -> vector<16x32xf32>
    %107 = arith.addf %83, %106 : vector<16x32xf32>
    %c0_48 = arith.constant 0 : index
    %c0_49 = arith.constant 0 : index
    %108 = vector.load %arg6[%c0_48, %c0_49] : memref<1x32xf32, #tpu.memory_space<vmem>>, vector<1x32xf32>
    %109 = vector.broadcast %108 : vector<1x32xf32> to vector<16x32xf32>
    %110 = arith.addf %107, %109 : vector<16x32xf32>
    %111 = arith.addf %110, %4 : vector<16x32xf32>
    %c0_50 = arith.constant 0 : index
    %c0_51 = arith.constant 0 : index
    %112 = vector.load %arg11[%c0_50, %c0_51] : memref<1x32xf32, #tpu.memory_space<vmem>>, vector<1x32xf32>
    %c0_52 = arith.constant 0 : index
    %c0_53 = arith.constant 0 : index
    %113 = vector.load %arg12[%c0_52, %c0_53] : memref<1x32xf32, #tpu.memory_space<vmem>>, vector<1x32xf32>
    %cst_54 = arith.constant dense<0.000000e+00> : vector<16xf32>
    %114 = vector.multi_reduction <add>, %111, %cst_54 [1] : vector<16x32xf32> to vector<16xf32>
    %115 = vector.shape_cast %114 : vector<16xf32> to vector<16x1xf32>
    %cst_55 = arith.constant 3.200000e+01 : f32
    %116 = vector.broadcast %cst_55 : f32 to vector<16x1xf32>
    %117 = arith.divf %115, %116 : vector<16x1xf32>
    %118 = vector.broadcast %117 : vector<16x1xf32> to vector<16x32xf32>
    %119 = arith.subf %111, %118 : vector<16x32xf32>
    %120 = arith.mulf %119, %119 : vector<16x32xf32>
    %cst_56 = arith.constant dense<0.000000e+00> : vector<16xf32>
    %121 = vector.multi_reduction <add>, %120, %cst_56 [1] : vector<16x32xf32> to vector<16xf32>
    %122 = vector.shape_cast %121 : vector<16xf32> to vector<16x1xf32>
    %cst_57 = arith.constant 3.200000e+01 : f32
    %123 = vector.broadcast %cst_57 : f32 to vector<16x1xf32>
    %124 = arith.divf %122, %123 : vector<16x1xf32>
    %125 = vector.broadcast %117 : vector<16x1xf32> to vector<16x32xf32>
    %126 = arith.subf %111, %125 : vector<16x32xf32>
    %cst_58 = arith.constant 9.99999974E-6 : f32
    %127 = vector.broadcast %cst_58 : f32 to vector<16x1xf32>
    %128 = arith.addf %124, %127 : vector<16x1xf32>
    %129 = math.rsqrt %128 : vector<16x1xf32>
    %130 = vector.broadcast %129 : vector<16x1xf32> to vector<16x32xf32>
    %131 = arith.mulf %126, %130 : vector<16x32xf32>
    %132 = vector.broadcast %112 : vector<1x32xf32> to vector<16x32xf32>
    %133 = arith.mulf %131, %132 : vector<16x32xf32>
    %134 = vector.broadcast %113 : vector<1x32xf32> to vector<16x32xf32>
    %135 = arith.addf %133, %134 : vector<16x32xf32>
    %c0_59 = arith.constant 0 : index
    %c0_60 = arith.constant 0 : index
    %136 = vector.load %arg7[%c0_59, %c0_60] : memref<32x64xf32, #tpu.memory_space<vmem>>, vector<32x64xf32>
    %cst_61 = arith.constant dense<0.000000e+00> : vector<16x64xf32>
    %137 = tpu.matmul %135, %136, %cst_61 {dimension_numbers = #tpu.dot_dimension_numbers<[1], [0], [0], [1], [0, 0, 1, 1], [], []>} : vector<16x32xf32>, vector<32x64xf32>, vector<16x64xf32> -> vector<16x64xf32>
    %c0_62 = arith.constant 0 : index
    %c0_63 = arith.constant 0 : index
    %138 = vector.load %arg8[%c0_62, %c0_63] : memref<1x64xf32, #tpu.memory_space<vmem>>, vector<1x64xf32>
    %139 = vector.broadcast %138 : vector<1x64xf32> to vector<16x64xf32>
    %140 = arith.addf %137, %139 : vector<16x64xf32>
    %cst_64 = arith.constant 0.000000e+00 : f32
    %141 = vector.broadcast %cst_64 : f32 to vector<16x64xf32>
    %142 = arith.maximumf %140, %141 : vector<16x64xf32>
    %c0_65 = arith.constant 0 : index
    %c0_66 = arith.constant 0 : index
    %143 = vector.load %arg9[%c0_65, %c0_66] : memref<64x32xf32, #tpu.memory_space<vmem>>, vector<64x32xf32>
    %cst_67 = arith.constant dense<0.000000e+00> : vector<16x32xf32>
    %144 = tpu.matmul %142, %143, %cst_67 {dimension_numbers = #tpu.dot_dimension_numbers<[1], [0], [0], [1], [0, 0, 1, 1], [], []>} : vector<16x64xf32>, vector<64x32xf32>, vector<16x32xf32> -> vector<16x32xf32>
    %c0_68 = arith.constant 0 : index
    %c0_69 = arith.constant 0 : index
    %145 = vector.load %arg10[%c0_68, %c0_69] : memref<1x32xf32, #tpu.memory_space<vmem>>, vector<1x32xf32>
    %146 = vector.broadcast %145 : vector<1x32xf32> to vector<16x32xf32>
    %147 = arith.addf %144, %146 : vector<16x32xf32>
    %148 = arith.addf %147, %135 : vector<16x32xf32>
    %c0_70 = arith.constant 0 : index
    %c0_71 = arith.constant 0 : index
    %149 = vector.load %arg13[%c0_70, %c0_71] : memref<1x32xf32, #tpu.memory_space<vmem>>, vector<1x32xf32>
    %c0_72 = arith.constant 0 : index
    %c0_73 = arith.constant 0 : index
    %150 = vector.load %arg14[%c0_72, %c0_73] : memref<1x32xf32, #tpu.memory_space<vmem>>, vector<1x32xf32>
    %cst_74 = arith.constant dense<0.000000e+00> : vector<16xf32>
    %151 = vector.multi_reduction <add>, %148, %cst_74 [1] : vector<16x32xf32> to vector<16xf32>
    %152 = vector.shape_cast %151 : vector<16xf32> to vector<16x1xf32>
    %cst_75 = arith.constant 3.200000e+01 : f32
    %153 = vector.broadcast %cst_75 : f32 to vector<16x1xf32>
    %154 = arith.divf %152, %153 : vector<16x1xf32>
    %155 = vector.broadcast %154 : vector<16x1xf32> to vector<16x32xf32>
    %156 = arith.subf %148, %155 : vector<16x32xf32>
    %157 = arith.mulf %156, %156 : vector<16x32xf32>
    %cst_76 = arith.constant dense<0.000000e+00> : vector<16xf32>
    %158 = vector.multi_reduction <add>, %157, %cst_76 [1] : vector<16x32xf32> to vector<16xf32>
    %159 = vector.shape_cast %158 : vector<16xf32> to vector<16x1xf32>
    %cst_77 = arith.constant 3.200000e+01 : f32
    %160 = vector.broadcast %cst_77 : f32 to vector<16x1xf32>
    %161 = arith.divf %159, %160 : vector<16x1xf32>
    %162 = vector.broadcast %154 : vector<16x1xf32> to vector<16x32xf32>
    %163 = arith.subf %148, %162 : vector<16x32xf32>
    %cst_78 = arith.constant 9.99999974E-6 : f32
    %164 = vector.broadcast %cst_78 : f32 to vector<16x1xf32>
    %165 = arith.addf %161, %164 : vector<16x1xf32>
    %166 = math.rsqrt %165 : vector<16x1xf32>
    %167 = vector.broadcast %166 : vector<16x1xf32> to vector<16x32xf32>
    %168 = arith.mulf %163, %167 : vector<16x32xf32>
    %169 = vector.broadcast %149 : vector<1x32xf32> to vector<16x32xf32>
    %170 = arith.mulf %168, %169 : vector<16x32xf32>
    %171 = vector.broadcast %150 : vector<1x32xf32> to vector<16x32xf32>
    %172 = arith.addf %170, %171 : vector<16x32xf32>
    %173 = vector.shape_cast %172 : vector<16x32xf32> to vector<2x8x32xf32>
    %c0_79 = arith.constant 0 : index
    %c0_80 = arith.constant 0 : index
    %c0_81 = arith.constant 0 : index
    %174 = vector.load %arg15[%c0_79, %c0_80, %c0_81] : memref<2x8x32xf32, #tpu.memory_space<vmem>>, vector<2x8x32xf32>
    tpu.vector_store %arg15[%c0_79, %c0_80, %c0_81], %173 {strides = array<i32>} : memref<2x8x32xf32, #tpu.memory_space<vmem>>, vector<2x8x32xf32>,
    return
  }
  func.func @transform_0(%arg0: i32) -> (i32, i32, i32) {
    %c0_i32 = arith.constant 0 : i32
    %c0_i32_0 = arith.constant 0 : i32
    %c0_i32_1 = arith.constant 0 : i32
    return %arg0, %c0_i32, %c0_i32_0 : i32, i32, i32
  }
  func.func @transform_1(%arg0: i32) -> (i32, i32, i32) {
    %c0_i32 = arith.constant 0 : i32
    %c0_i32_0 = arith.constant 0 : i32
    %c0_i32_1 = arith.constant 0 : i32
    return %arg0, %c0_i32, %c0_i32_0 : i32, i32, i32
  }
  func.func @transform_2(%arg0: i32) -> (i32, i32) {
    %c0_i32 = arith.constant 0 : i32
    %c0_i32_0 = arith.constant 0 : i32
    %c0_i32_1 = arith.constant 0 : i32
    return %c0_i32, %c0_i32_0 : i32, i32
  }
  func.func @transform_3(%arg0: i32) -> (i32, i32) {
    %c0_i32 = arith.constant 0 : i32
    %c0_i32_0 = arith.constant 0 : i32
    %c0_i32_1 = arith.constant 0 : i32
    return %c0_i32, %c0_i32_0 : i32, i32
  }
  func.func @transform_4(%arg0: i32) -> (i32, i32, i32) {
    %c0_i32 = arith.constant 0 : i32
    %c0_i32_0 = arith.constant 0 : i32
    %c0_i32_1 = arith.constant 0 : i32
    %c0_i32_2 = arith.constant 0 : i32
    return %c0_i32, %c0_i32_0, %c0_i32_1 : i32, i32, i32
  }
  func.func @transform_5(%arg0: i32) -> (i32, i32) {
    %c0_i32 = arith.constant 0 : i32
    %c0_i32_0 = arith.constant 0 : i32
    %c0_i32_1 = arith.constant 0 : i32
    return %c0_i32, %c0_i32_0 : i32, i32
  }
  func.func @transform_6(%arg0: i32) -> (i32, i32) {
    %c0_i32 = arith.constant 0 : i32
    %c0_i32_0 = arith.constant 0 : i32
    %c0_i32_1 = arith.constant 0 : i32
    return %c0_i32, %c0_i32_0 : i32, i32
  }
  func.func @transform_7(%arg0: i32) -> (i32, i32) {
    %c0_i32 = arith.constant 0 : i32
    %c0_i32_0 = arith.constant 0 : i32
    %c0_i32_1 = arith.constant 0 : i32
    return %c0_i32, %c0_i32_0 : i32, i32
  }
  func.func @transform_8(%arg0: i32) -> (i32, i32) {
    %c0_i32 = arith.constant 0 : i32
    %c0_i32_0 = arith.constant 0 : i32
    %c0_i32_1 = arith.constant 0 : i32
    return %c0_i32, %c0_i32_0 : i32, i32
  }
  func.func @transform_9(%arg0: i32) -> (i32, i32) {
    %c0_i32 = arith.constant 0 : i32
    %c0_i32_0 = arith.constant 0 : i32
    %c0_i32_1 = arith.constant 0 : i32
    return %c0_i32, %c0_i32_0 : i32, i32
  }
  func.func @transform_10(%arg0: i32) -> (i32, i32) {
    %c0_i32 = arith.constant 0 : i32
    %c0_i32_0 = arith.constant 0 : i32
    %c0_i32_1 = arith.constant 0 : i32
    return %c0_i32, %c0_i32_0 : i32, i32
  }
  func.func @transform_11(%arg0: i32) -> (i32, i32) {
    %c0_i32 = arith.constant 0 : i32
    %c0_i32_0 = arith.constant 0 : i32
    %c0_i32_1 = arith.constant 0 : i32
    return %c0_i32, %c0_i32_0 : i32, i32
  }
  func.func @transform_12(%arg0: i32) -> (i32, i32) {
    %c0_i32 = arith.constant 0 : i32
    %c0_i32_0 = arith.constant 0 : i32
    %c0_i32_1 = arith.constant 0 : i32
    return %c0_i32, %c0_i32_0 : i32, i32
  }
  func.func @transform_13(%arg0: i32) -> (i32, i32) {
    %c0_i32 = arith.constant 0 : i32
    %c0_i32_0 = arith.constant 0 : i32
    %c0_i32_1 = arith.constant 0 : i32
    return %c0_i32, %c0_i32_0 : i32, i32
  }
  func.func @transform_14(%arg0: i32) -> (i32, i32, i32) {
    %c0_i32 = arith.constant 0 : i32
    %c0_i32_0 = arith.constant 0 : i32
    %c0_i32_1 = arith.constant 0 : i32
    return %arg0, %c0_i32, %c0_i32_0 : i32, i32, i32
  }
}

</mosaic_0001>

<llo_original>
// kernel: tpu_custom_call.1
$region0: #{tpu_custom_call.1}
  #allocation0 [shape = 'u32[]', space=smem, size = 0x4, offset = 0x4, fixed_abs, tag = 'smem constant byte address 0x4 - core index']
  #allocation1 [shape = 'u32[144,128]{1,0:T(1,128)}', space=vmem, size = 0x12000, scoped, tag = 'internal scratch']
  %s0 = inlined_call_operand.hbm [shape: f32[2,8,32], index: 0, kind: input, shape index: {}]
  %s1 = inlined_call_operand.hbm [shape: f32[2,1,8], index: 1, kind: input, shape index: {}]
  %s2 = inlined_call_operand.vmem [shape: f32[32,32], index: 2, kind: input, shape index: {}]
  %s3 = inlined_call_operand.vmem [shape: f32[1,32], index: 3, kind: input, shape index: {}]
  %s4 = inlined_call_operand.vmem [shape: f32[4,8,32], index: 4, kind: input, shape index: {}]
  %s5 = inlined_call_operand.vmem [shape: f32[1,32], index: 5, kind: input, shape index: {}]
  %s6 = inlined_call_operand.vmem [shape: f32[32,64], index: 6, kind: input, shape index: {}]
  %s7 = inlined_call_operand.vmem [shape: f32[1,64], index: 7, kind: input, shape index: {}]
  %s8 = inlined_call_operand.vmem [shape: f32[64,32], index: 8, kind: input, shape index: {}]
  %s9 = inlined_call_operand.vmem [shape: f32[1,32], index: 9, kind: input, shape index: {}]
  %s10 = inlined_call_operand.vmem [shape: f32[1,32], index: 10, kind: input, shape index: {}]
  %s11 = inlined_call_operand.vmem [shape: f32[1,32], index: 11, kind: input, shape index: {}]
  %s12 = inlined_call_operand.vmem [shape: f32[1,32], index: 12, kind: input, shape index: {}]
  %s13 = inlined_call_operand.vmem [shape: f32[1,32], index: 13, kind: input, shape index: {}]
  %s14 = inlined_call_operand.hbm [shape: f32[2,8,32], index: 14, kind: output, shape index: {}]
  %s15 = sld [smem:[#allocation0]]
  $region74: #{tpu_custom_call.1} parent=0
    _
  %s17 = ssub.s32 1, %s15
  %s18 = scalar_select 0, %s17, %s15
  $region1: #{tpu_custom_call.1} parent=0
    #allocation2 [shape = 'u8[8192]{0}', space=vmem, size = 0x2000, scoped, tag = 'input window, operand 0, single buffered']
    #allocation3 [shape = 's32[1]{0}', space=sflag, size = 0x4, scoped, tag = 'scoped memory for tpu_custom_call.1']
    #allocation4 [shape = 's32[1]{0}', space=sflag, size = 0x4, scoped, tag = 'scoped memory for tpu_custom_call.1']
    #allocation5 [shape = 'u8[1024]{0}', space=vmem, size = 0x400, scoped, tag = 'input window, operand 1, single buffered']
    #allocation6 [shape = 's32[1]{0}', space=sflag, size = 0x4, scoped, tag = 'scoped memory for tpu_custom_call.1']
    #allocation7 [shape = 'u8[8192]{0}', space=vmem, size = 0x2000, scoped, tag = 'output window, operand 0, single buffered']
    %19 = vsyncpa [#allocation3], 0
    %20 = vsyncpa [#allocation6], 0
    %21 = vsyncpa [#allocation4], 0
    // Predicated region
    $region2: #{tpu_custom_call.1} parent=1 // pred_check
      _
    $region3: #{tpu_custom_call.1} parent=1 // pred_check_branch
      %23 = sbr.rel (0) target = $region5
    $region4: #{tpu_custom_call.1} parent=1 // pred_region
      %s25 = ssub.s32 256, 256
      %26 = vsyncadd [#allocation3], %s25
      %s27 = sshll.u32 [#allocation2], 4
      %s28 = int_to_ptr.vmem [resolvable:$true] %s27
      %33 = dma.hbm_to_vmem [thread:$0]  %s0, 256, %s28, [#allocation3], 128, 128, 8
    $region5: #{tpu_custom_call.1} parent=1 // pred_fallthru
      _
    // Predicated region
    $region6: #{tpu_custom_call.1} parent=1 // pred_check
      _
    $region7: #{tpu_custom_call.1} parent=1 // pred_check_branch
      %35 = sbr.rel (0) target = $region9
    $region8: #{tpu_custom_call.1} parent=1 // pred_region
      %s37 = ssub.s32 32, 32
      %38 = vsyncadd [#allocation6], %s37
      %s39 = sshll.u32 [#allocation5], 4
      %s40 = int_to_ptr.vmem [resolvable:$true] %s39
      %45 = dma.hbm_to_vmem [thread:$0]  %s1, 32, %s40, [#allocation6], 16, 16, 1
    $region9: #{tpu_custom_call.1} parent=1 // pred_fallthru
      _
    // Predicated region
    $region10: #{tpu_custom_call.1} parent=1 // pred_check
      _
    $region11: #{tpu_custom_call.1} parent=1 // pred_check_branch
      %47 = sbr.rel (0) target = $region13
    $region12: #{tpu_custom_call.1} parent=1 // pred_region
      _
    $region13: #{tpu_custom_call.1} parent=1 // pred_fallthru
      _
    // Predicated region
    $region14: #{tpu_custom_call.1} parent=1 // pred_check
      _
    $region15: #{tpu_custom_call.1} parent=1 // pred_check_branch
      %49 = sbr.rel (0) target = $region17
    $region16: #{tpu_custom_call.1} parent=1 // pred_region
      _
    $region17: #{tpu_custom_call.1} parent=1 // pred_fallthru
      _
    // Predicated region
    $region18: #{tpu_custom_call.1} parent=1 // pred_check
      _
    $region19: #{tpu_custom_call.1} parent=1 // pred_check_branch
      %51 = sbr.rel (0) target = $region21
    $region20: #{tpu_custom_call.1} parent=1 // pred_region
      _
    $region21: #{tpu_custom_call.1} parent=1 // pred_fallthru
      _
    // Predicated region
    $region22: #{tpu_custom_call.1} parent=1 // pred_check
      _
    $region23: #{tpu_custom_call.1} parent=1 // pred_check_branch
      %53 = sbr.rel (0) target = $region25
    $region24: #{tpu_custom_call.1} parent=1 // pred_region
      _
    $region25: #{tpu_custom_call.1} parent=1 // pred_fallthru
      _
    // Predicated region
    $region26: #{tpu_custom_call.1} parent=1 // pred_check
      _
    $region27: #{tpu_custom_call.1} parent=1 // pred_check_branch
      %55 = sbr.rel (0) target = $region29
    $region28: #{tpu_custom_call.1} parent=1 // pred_region
      _
    $region29: #{tpu_custom_call.1} parent=1 // pred_fallthru
      _
    // Predicated region
    $region30: #{tpu_custom_call.1} parent=1 // pred_check
      _
    $region31: #{tpu_custom_call.1} parent=1 // pred_check_branch
      %57 = sbr.rel (0) target = $region33
    $region32: #{tpu_custom_call.1} parent=1 // pred_region
      _
    $region33: #{tpu_custom_call.1} parent=1 // pred_fallthru
      _
    // Predicated region
    $region34: #{tpu_custom_call.1} parent=1 // pred_check
      _
    $region35: #{tpu_custom_call.1} parent=1 // pred_check_branch
      %59 = sbr.rel (0) target = $region37
    $region36: #{tpu_custom_call.1} parent=1 // pred_region
      _
    $region37: #{tpu_custom_call.1} parent=1 // pred_fallthru
      _
    // Predicated region
    $region38: #{tpu_custom_call.1} parent=1 // pred_check
      _
    $region39: #{tpu_custom_call.1} parent=1 // pred_check_branch
      %61 = sbr.rel (0) target = $region41
    $region40: #{tpu_custom_call.1} parent=1 // pred_region
      _
    $region41: #{tpu_custom_call.1} parent=1 // pred_fallthru
      _
    // Predicated region
    $region42: #{tpu_custom_call.1} parent=1 // pred_check
      _
    $region43: #{tpu_custom_call.1} parent=1 // pred_check_branch
      %63 = sbr.rel (0) target = $region45
    $region44: #{tpu_custom_call.1} parent=1 // pred_region
      _
    $region45: #{tpu_custom_call.1} parent=1 // pred_fallthru
      _
    // Predicated region
    $region46: #{tpu_custom_call.1} parent=1 // pred_check
      _
    $region47: #{tpu_custom_call.1} parent=1 // pred_check_branch
      %65 = sbr.rel (0) target = $region49
    $region48: #{tpu_custom_call.1} parent=1 // pred_region
      _
    $region49: #{tpu_custom_call.1} parent=1 // pred_fallthru
      _
    // Predicated region
    $region50: #{tpu_custom_call.1} parent=1 // pred_check
      _
    $region51: #{tpu_custom_call.1} parent=1 // pred_check_branch
      %67 = sbr.rel (0) target = $region53
    $region52: #{tpu_custom_call.1} parent=1 // pred_region
      _
    $region53: #{tpu_custom_call.1} parent=1 // pred_fallthru
      _
    // Predicated region
    $region54: #{tpu_custom_call.1} parent=1 // pred_check
      _
    $region55: #{tpu_custom_call.1} parent=1 // pred_check_branch
      %69 = sbr.rel (0) target = $region57
    $region56: #{tpu_custom_call.1} parent=1 // pred_region
      _
    $region57: #{tpu_custom_call.1} parent=1 // pred_fallthru
      _
    // Predicated region
    $region58: #{tpu_custom_call.1} parent=1 // pred_check
      _
    $region59: #{tpu_custom_call.1} parent=1 // pred_check_branch
      %71 = sbr.rel (0) target = $region61
    $region60: #{tpu_custom_call.1} parent=1 // pred_region
      %72 = dma.done [#allocation3], 256
    $region61: #{tpu_custom_call.1} parent=1 // pred_fallthru
      _
    // Predicated region
    $region62: #{tpu_custom_call.1} parent=1 // pred_check
      _
    $region63: #{tpu_custom_call.1} parent=1 // pred_check_branch
      %74 = sbr.rel (0) target = $region65
    $region64: #{tpu_custom_call.1} parent=1 // pred_region
      %75 = dma.done [#allocation6], 32
    $region65: #{tpu_custom_call.1} parent=1 // pred_fallthru
      _
    %v76 = vld [vmem:[#allocation2] sm:$0xff]
    %v77 = vld [vmem:[#allocation2 + $0x8] sm:$0xff]
    %v78 = vld [vmem:[#allocation5] sm:$0x1]
    %v79 = vld [vmem:[#allocation5 + $0x1] sm:$0x1]
    %vm80 = vcmp.gt.f32.partialorder %v78, 0.5
    %vm81 = vcmp.gt.f32.partialorder %v79, 0.5
    %v82 = vld [vmem:[%s2] sm:$0xff]
    %v83 = vld [vmem:[%s2 + $0x8] sm:$0xff]
    %v84 = vld [vmem:[%s2 + $0x10] sm:$0xff]
    %v85 = vld [vmem:[%s2 + $0x18] sm:$0xff]
    %v86 = vld [vmem:[%s3] sm:$0x1]
    %v88 = vlaneseq
    %v89 = vshrl.u32 %v88, 7
    %v90 = vsub.s32 0, %v89
    %v91 = vrot.slane %v86, %v90
    %vm93 = vcmask 261120
    %v95 = vsel %vm93, %v76, 0
    %v98 = vsel %vm93, %v77, 0
    %100 = vmatprep.subr.mxu0 0.0
    %101 = vmatpush1.msra.mxu0 0.0
    %102 = vmatprep.subr.mxu0 0.0
    %103 = vmatpush1.msra.mxu0 0.0
    %104 = vmatprep.subr.mxu0 0.0
    %105 = vmatpush1.msra.mxu0 0.0
    %106 = vmatprep.subr.mxu0 0.0
    %107 = vmatpush1.msra.mxu0 0.0
    %108 = vmatprep.subr.mxu0 0.0
    %109 = vmatpush1.msra.mxu0 0.0
    %110 = vmatprep.subr.mxu0 0.0
    %111 = vmatpush1.msra.mxu0 0.0
    %112 = vmatprep.subr.mxu0 0.0
    %113 = vmatpush1.msra.mxu0 0.0
    %114 = vmatprep.subr.mxu0 0.0
    %115 = vmatpush1.msra.mxu0 0.0
    %116 = vmatprep.subr.mxu0 0.0
    %117 = vmatpush1.msra.mxu0 0.0
    %118 = vmatprep.subr.mxu0 0.0
    %119 = vmatpush1.msra.mxu0 0.0
    %120 = vmatprep.subr.mxu0 0.0
    %121 = vmatpush1.msra.mxu0 0.0
    %122 = vmatprep.subr.mxu0 0.0
    %123 = vmatpush1.msra.mxu0 0.0
    %124 = vmatprep.subr.mxu0 0.0
    %125 = vmatpush1.msra.mxu0 %v85
    %126 = vmatprep.subr.mxu0 0.0
    %127 = vmatpush1.msra.mxu0 %v84
    %128 = vmatprep.subr.mxu0 0.0
    %129 = vmatpush1.msra.mxu0 %v83
    %130 = vmatprep.subr.mxu0 0.0
    %131 = vmatpush1.msra.mxu0 %v82
    %132 = vmatprep.subr.mxu0 0.0
    %133 = vmatpush2.msra.mxu0 0.0
    %134 = vmatprep.subr.mxu0 0.0
    %135 = vmatpush2.msra.mxu0 0.0
    %136 = vmatprep.subr.mxu0 0.0
    %137 = vmatpush2.msra.mxu0 0.0
    %138 = vmatprep.subr.mxu0 0.0
    %139 = vmatpush2.msra.mxu0 0.0
    %140 = vmatprep.subr.mxu0 0.0
    %141 = vmatpush2.msra.mxu0 0.0
    %142 = vmatprep.subr.mxu0 0.0
    %143 = vmatpush2.msra.mxu0 0.0
    %144 = vmatprep.subr.mxu0 0.0
    %145 = vmatpush2.msra.mxu0 0.0
    %146 = vmatprep.subr.mxu0 0.0
    %147 = vmatpush2.msra.mxu0 0.0
    %148 = vmatprep.subr.mxu0 0.0
    %149 = vmatpush2.msra.mxu0 0.0
    %150 = vmatprep.subr.mxu0 0.0
    %151 = vmatpush2.msra.mxu0 0.0
    %152 = vmatprep.subr.mxu0 0.0
    %153 = vmatpush2.msra.mxu0 0.0
    %154 = vmatprep.subr.mxu0 0.0
    %155 = vmatpush2.msra.mxu0 0.0
    %156 = vmatprep.subr.mxu0 0.0
    %157 = vmatpush2.msra.mxu0 0.0
    %158 = vmatprep.subr.mxu0 0.0
    %159 = vmatpush2.msra.mxu0 0.0
    %160 = vmatprep.subr.mxu0 0.0
    %161 = vmatpush2.msra.mxu0 0.0
    %162 = vmatprep.subr.mxu0 0.0
    %163 = vmatpush2.msra.mxu0 0.0
    %164 = vmatprep.mubr.f32.mxu0 0.0
    %165 = vmatmul.mubr.f32.gmra.mxu0 %v95
    %v166 = vpop.f32.mrf.mxu0
    %v167 = vadd.f32 %v91, %v166
    %v168 = vpop.f32.mrf.mxu0
    %169 = vmatprep.mubr.f32.mxu0 0.0
    %170 = vmatmul.mubr.f32.gmra.mxu0 %v98
    %v171 = vpop.f32.mrf.mxu0
    %v172 = vadd.f32 %v91, %v171
    %v173 = vpop.f32.mrf.mxu0
    %174 = vdwg.mxu0
    %v175 = vmul.f32 %v167, 0.35355338
    %v176 = vmul.f32 %v172, 0.35355338
    %vm177 = vcmask 64512
    %v179 = vsel %vm177, %v175, 0
    %v182 = vsel %vm177, %v167, 0
    %184 = vmatprep.subr.mxu0 0.0
    %185 = vmatpush1.xpose.msra.mxu0 0.0
    %186 = vmatprep.subr.mxu0 0.0
    %187 = vmatpush1.xpose.msra.mxu0 0.0
    %188 = vmatprep.subr.mxu0 0.0
    %189 = vmatpush1.xpose.msra.mxu0 0.0
    %190 = vmatprep.subr.mxu0 0.0
    %191 = vmatpush1.xpose.msra.mxu0 0.0
    %192 = vmatprep.subr.mxu0 0.0
    %193 = vmatpush1.xpose.msra.mxu0 0.0
    %194 = vmatprep.subr.mxu0 0.0
    %195 = vmatpush1.xpose.msra.mxu0 0.0
    %196 = vmatprep.subr.mxu0 0.0
    %197 = vmatpush1.xpose.msra.mxu0 0.0
    %198 = vmatprep.subr.mxu0 0.0
    %199 = vmatpush1.xpose.msra.mxu0 0.0
    %200 = vmatprep.subr.mxu0 0.0
    %201 = vmatpush1.xpose.msra.mxu0 0.0
    %202 = vmatprep.subr.mxu0 0.0
    %203 = vmatpush1.xpose.msra.mxu0 0.0
    %204 = vmatprep.subr.mxu0 0.0
    %205 = vmatpush1.xpose.msra.mxu0 0.0
    %206 = vmatprep.subr.mxu0 0.0
    %207 = vmatpush1.xpose.msra.mxu0 0.0
    %208 = vmatprep.subr.mxu0 0.0
    %209 = vmatpush1.xpose.msra.mxu0 0.0
    %210 = vmatprep.subr.mxu0 0.0
    %211 = vmatpush1.xpose.msra.mxu0 0.0
    %212 = vmatprep.subr.mxu0 0.0
    %213 = vmatpush1.xpose.msra.mxu0 0.0
    %214 = vmatprep.subr.mxu0 0.0
    %215 = vmatpush1.xpose.msra.mxu0 %v182
    %216 = vmatprep.subr.mxu0 0.0
    %217 = vmatpush2.xpose.msra.mxu0 0.0
    %218 = vmatprep.subr.mxu0 0.0
    %219 = vmatpush2.xpose.msra.mxu0 0.0
    %220 = vmatprep.subr.mxu0 0.0
    %221 = vmatpush2.xpose.msra.mxu0 0.0
    %222 = vmatprep.subr.mxu0 0.0
    %223 = vmatpush2.xpose.msra.mxu0 0.0
    %224 = vmatprep.subr.mxu0 0.0
    %225 = vmatpush2.xpose.msra.mxu0 0.0
    %226 = vmatprep.subr.mxu0 0.0
    %227 = vmatpush2.xpose.msra.mxu0 0.0
    %228 = vmatprep.subr.mxu0 0.0
    %229 = vmatpush2.xpose.msra.mxu0 0.0
    %230 = vmatprep.subr.mxu0 0.0
    %231 = vmatpush2.xpose.msra.mxu0 0.0
    %232 = vmatprep.subr.mxu0 0.0
    %233 = vmatpush2.xpose.msra.mxu0 0.0
    %234 = vmatprep.subr.mxu0 0.0
    %235 = vmatpush2.xpose.msra.mxu0 0.0
    %236 = vmatprep.subr.mxu0 0.0
    %237 = vmatpush2.xpose.msra.mxu0 0.0
    %238 = vmatprep.subr.mxu0 0.0
    %239 = vmatpush2.xpose.msra.mxu0 0.0
    %240 = vmatprep.subr.mxu0 0.0
    %241 = vmatpush2.xpose.msra.mxu0 0.0
    %242 = vmatprep.subr.mxu0 0.0
    %243 = vmatpush2.xpose.msra.mxu0 0.0
    %244 = vmatprep.subr.mxu0 0.0
    %245 = vmatpush2.xpose.msra.mxu0 0.0
    %246 = vmatprep.subr.mxu0 0.0
    %247 = vmatpush2.xpose.msra.mxu0 0.0
    %248 = vmatprep.mubr.f32.mxu0 0.0
    %249 = vmatmul.mubr.f32.gmra.mxu0 %v179
    %v250 = vpop.f32.mrf.mxu0
    %v251 = vadd.f32 0.0, %v250
    %v252 = vpop.f32.mrf.mxu0
    %253 = vdwg.mxu0
    %v255 = vsel %vm177, %v176, 0
    %v258 = vsel %vm177, %v172, 0
    %260 = vmatprep.subr.mxu0 0.0
    %261 = vmatpush1.xpose.msra.mxu0 0.0
    %262 = vmatprep.subr.mxu0 0.0
    %263 = vmatpush1.xpose.msra.mxu0 0.0
    %264 = vmatprep.subr.mxu0 0.0
    %265 = vmatpush1.xpose.msra.mxu0 0.0
    %266 = vmatprep.subr.mxu0 0.0
    %267 = vmatpush1.xpose.msra.mxu0 0.0
    %268 = vmatprep.subr.mxu0 0.0
    %269 = vmatpush1.xpose.msra.mxu0 0.0
    %270 = vmatprep.subr.mxu0 0.0
    %271 = vmatpush1.xpose.msra.mxu0 0.0
    %272 = vmatprep.subr.mxu0 0.0
    %273 = vmatpush1.xpose.msra.mxu0 0.0
    %274 = vmatprep.subr.mxu0 0.0
    %275 = vmatpush1.xpose.msra.mxu0 0.0
    %276 = vmatprep.subr.mxu0 0.0
    %277 = vmatpush1.xpose.msra.mxu0 0.0
    %278 = vmatprep.subr.mxu0 0.0
    %279 = vmatpush1.xpose.msra.mxu0 0.0
    %280 = vmatprep.subr.mxu0 0.0
    %281 = vmatpush1.xpose.msra.mxu0 0.0
    %282 = vmatprep.subr.mxu0 0.0
    %283 = vmatpush1.xpose.msra.mxu0 0.0
    %284 = vmatprep.subr.mxu0 0.0
    %285 = vmatpush1.xpose.msra.mxu0 0.0
    %286 = vmatprep.subr.mxu0 0.0
    %287 = vmatpush1.xpose.msra.mxu0 0.0
    %288 = vmatprep.subr.mxu0 0.0
    %289 = vmatpush1.xpose.msra.mxu0 0.0
    %290 = vmatprep.subr.mxu0 0.0
    %291 = vmatpush1.xpose.msra.mxu0 %v258
    %292 = vmatprep.subr.mxu0 0.0
    %293 = vmatpush2.xpose.msra.mxu0 0.0
    %294 = vmatprep.subr.mxu0 0.0
    %295 = vmatpush2.xpose.msra.mxu0 0.0
    %296 = vmatprep.subr.mxu0 0.0
    %297 = vmatpush2.xpose.msra.mxu0 0.0
    %298 = vmatprep.subr.mxu0 0.0
    %299 = vmatpush2.xpose.msra.mxu0 0.0
    %300 = vmatprep.subr.mxu0 0.0
    %301 = vmatpush2.xpose.msra.mxu0 0.0
    %302 = vmatprep.subr.mxu0 0.0
    %303 = vmatpush2.xpose.msra.mxu0 0.0
    %304 = vmatprep.subr.mxu0 0.0
    %305 = vmatpush2.xpose.msra.mxu0 0.0
    %306 = vmatprep.subr.mxu0 0.0
    %307 = vmatpush2.xpose.msra.mxu0 0.0
    %308 = vmatprep.subr.mxu0 0.0
    %309 = vmatpush2.xpose.msra.mxu0 0.0
    %310 = vmatprep.subr.mxu0 0.0
    %311 = vmatpush2.xpose.msra.mxu0 0.0
    %312 = vmatprep.subr.mxu0 0.0
    %313 = vmatpush2.xpose.msra.mxu0 0.0
    %314 = vmatprep.subr.mxu0 0.0
    %315 = vmatpush2.xpose.msra.mxu0 0.0
    %316 = vmatprep.subr.mxu0 0.0
    %317 = vmatpush2.xpose.msra.mxu0 0.0
    %318 = vmatprep.subr.mxu0 0.0
    %319 = vmatpush2.xpose.msra.mxu0 0.0
    %320 = vmatprep.subr.mxu0 0.0
    %321 = vmatpush2.xpose.msra.mxu0 0.0
    %322 = vmatprep.subr.mxu0 0.0
    %323 = vmatpush2.xpose.msra.mxu0 0.0
    %324 = vmatprep.mubr.f32.mxu0 0.0
    %325 = vmatmul.mubr.f32.gmra.mxu0 %v255
    %v326 = vpop.f32.mrf.mxu0
    %v327 = vadd.f32 0.0, %v326
    %v328 = vpop.f32.mrf.mxu0
    %329 = vdwg.mxu0
    %v330 = vsel %vm80, 1, 0
    %v331 = vsel %vm81, 1, 0
    %v332 = vlaneseq
    %v333 = vshrl.u32 %v332, 7
    %v334 = vsub.s32 0, %v333
    %v335 = vrot.slane %v330, %v334
    %v336 = vlaneseq
    %v337 = vshrl.u32 %v336, 7
    %v338 = vsub.s32 0, %v337
    %v339 = vrot.slane %v331, %v338
    %vm340 = vcmp.eq.s32.totalorder %v335, 1
    %vm341 = vcmp.eq.s32.totalorder %v339, 1
    %v342 = vsel %vm340, %v251, -inf
    %v343 = vsel %vm341, %v327, -inf
    %v344 = vsel %vm177, %v342, -inf
    %345 = vmax.xlane.f32.xlu0 %v344
    %v346 = vpop.xlane.xlu0 %345
    %v347 = vsel %vm177, %v343, -inf
    %348 = vmax.xlane.f32.xlu0 %v347
    %v349 = vpop.xlane.xlu0 %348
    %v350 = vsub.f32 %v342, %v346
    %v351 = vsub.f32 %v343, %v349
    %v352 = vmul.f32 %v350, 1.442695
    %v353 = vpow.pop %v352
    %v354 = vmul.f32 %v351, 1.442695
    %v355 = vpow.pop %v354
    %v356 = vsel %vm177, %v353, 0.0
    %357 = vadd.xlane.f32.xlu0 %v356
    %v358 = vpop.xlane.xlu0 %357
    %v359 = vsel %vm177, %v355, 0.0
    %360 = vadd.xlane.f32.xlu0 %v359
    %v361 = vpop.xlane.xlu0 %360
    %v362 = vrcp.pop %v358
    %v363 = vrcp.pop %v361
    %v364 = vmul.f32 %v353, %v362
    %v365 = vmul.f32 %v355, %v363
    %v367 = vsel %vm177, %v364, 0
    %369 = vmatprep.subr.mxu0 0.0
    %370 = vmatpush1.msra.mxu0 0.0
    %371 = vmatprep.subr.mxu0 0.0
    %372 = vmatpush1.msra.mxu0 0.0
    %373 = vmatprep.subr.mxu0 0.0
    %374 = vmatpush1.msra.mxu0 0.0
    %375 = vmatprep.subr.mxu0 0.0
    %376 = vmatpush1.msra.mxu0 0.0
    %377 = vmatprep.subr.mxu0 0.0
    %378 = vmatpush1.msra.mxu0 0.0
    %379 = vmatprep.subr.mxu0 0.0
    %380 = vmatpush1.msra.mxu0 0.0
    %381 = vmatprep.subr.mxu0 0.0
    %382 = vmatpush1.msra.mxu0 0.0
    %383 = vmatprep.subr.mxu0 0.0
    %384 = vmatpush1.msra.mxu0 0.0
    %385 = vmatprep.subr.mxu0 0.0
    %386 = vmatpush1.msra.mxu0 0.0
    %387 = vmatprep.subr.mxu0 0.0
    %388 = vmatpush1.msra.mxu0 0.0
    %389 = vmatprep.subr.mxu0 0.0
    %390 = vmatpush1.msra.mxu0 0.0
    %391 = vmatprep.subr.mxu0 0.0
    %392 = vmatpush1.msra.mxu0 0.0
    %393 = vmatprep.subr.mxu0 0.0
    %394 = vmatpush1.msra.mxu0 0.0
    %395 = vmatprep.subr.mxu0 0.0
    %396 = vmatpush1.msra.mxu0 0.0
    %397 = vmatprep.subr.mxu0 0.0
    %398 = vmatpush1.msra.mxu0 0.0
    %399 = vmatprep.subr.mxu0 0.0
    %400 = vmatpush1.msra.mxu0 %v167
    %401 = vmatprep.subr.mxu0 0.0
    %402 = vmatpush2.msra.mxu0 0.0
    %403 = vmatprep.subr.mxu0 0.0
    %404 = vmatpush2.msra.mxu0 0.0
    %405 = vmatprep.subr.mxu0 0.0
    %406 = vmatpush2.msra.mxu0 0.0
    %407 = vmatprep.subr.mxu0 0.0
    %408 = vmatpush2.msra.mxu0 0.0
    %409 = vmatprep.subr.mxu0 0.0
    %410 = vmatpush2.msra.mxu0 0.0
    %411 = vmatprep.subr.mxu0 0.0
    %412 = vmatpush2.msra.mxu0 0.0
    %413 = vmatprep.subr.mxu0 0.0
    %414 = vmatpush2.msra.mxu0 0.0
    %415 = vmatprep.subr.mxu0 0.0
    %416 = vmatpush2.msra.mxu0 0.0
    %417 = vmatprep.subr.mxu0 0.0
    %418 = vmatpush2.msra.mxu0 0.0
    %419 = vmatprep.subr.mxu0 0.0
    %420 = vmatpush2.msra.mxu0 0.0
    %421 = vmatprep.subr.mxu0 0.0
    %422 = vmatpush2.msra.mxu0 0.0
    %423 = vmatprep.subr.mxu0 0.0
    %424 = vmatpush2.msra.mxu0 0.0
    %425 = vmatprep.subr.mxu0 0.0
    %426 = vmatpush2.msra.mxu0 0.0
    %427 = vmatprep.subr.mxu0 0.0
    %428 = vmatpush2.msra.mxu0 0.0
    %429 = vmatprep.subr.mxu0 0.0
    %430 = vmatpush2.msra.mxu0 0.0
    %431 = vmatprep.subr.mxu0 0.0
    %432 = vmatpush2.msra.mxu0 0.0
    %433 = vmatprep.mubr.f32.mxu0 0.0
    %434 = vmatmul.mubr.f32.gmra.mxu0 %v367
    %v435 = vpop.f32.mrf.mxu0
    %v436 = vadd.f32 0.0, %v435
    %v437 = vpop.f32.mrf.mxu0
    %438 = vdwg.mxu0
    %v440 = vsel %vm177, %v365, 0
    %442 = vmatprep.subr.mxu0 0.0
    %443 = vmatpush1.msra.mxu0 0.0
    %444 = vmatprep.subr.mxu0 0.0
    %445 = vmatpush1.msra.mxu0 0.0
    %446 = vmatprep.subr.mxu0 0.0
    %447 = vmatpush1.msra.mxu0 0.0
    %448 = vmatprep.subr.mxu0 0.0
    %449 = vmatpush1.msra.mxu0 0.0
    %450 = vmatprep.subr.mxu0 0.0
    %451 = vmatpush1.msra.mxu0 0.0
    %452 = vmatprep.subr.mxu0 0.0
    %453 = vmatpush1.msra.mxu0 0.0
    %454 = vmatprep.subr.mxu0 0.0
    %455 = vmatpush1.msra.mxu0 0.0
    %456 = vmatprep.subr.mxu0 0.0
    %457 = vmatpush1.msra.mxu0 0.0
    %458 = vmatprep.subr.mxu0 0.0
    %459 = vmatpush1.msra.mxu0 0.0
    %460 = vmatprep.subr.mxu0 0.0
    %461 = vmatpush1.msra.mxu0 0.0
    %462 = vmatprep.subr.mxu0 0.0
    %463 = vmatpush1.msra.mxu0 0.0
    %464 = vmatprep.subr.mxu0 0.0
    %465 = vmatpush1.msra.mxu0 0.0
    %466 = vmatprep.subr.mxu0 0.0
    %467 = vmatpush1.msra.mxu0 0.0
    %468 = vmatprep.subr.mxu0 0.0
    %469 = vmatpush1.msra.mxu0 0.0
    %470 = vmatprep.subr.mxu0 0.0
    %471 = vmatpush1.msra.mxu0 0.0
    %472 = vmatprep.subr.mxu0 0.0
    %473 = vmatpush1.msra.mxu0 %v172
    %474 = vmatprep.subr.mxu0 0.0
    %475 = vmatpush2.msra.mxu0 0.0
    %476 = vmatprep.subr.mxu0 0.0
    %477 = vmatpush2.msra.mxu0 0.0
    %478 = vmatprep.subr.mxu0 0.0
    %479 = vmatpush2.msra.mxu0 0.0
    %480 = vmatprep.subr.mxu0 0.0
    %481 = vmatpush2.msra.mxu0 0.0
    %482 = vmatprep.subr.mxu0 0.0
    %483 = vmatpush2.msra.mxu0 0.0
    %484 = vmatprep.subr.mxu0 0.0
    %485 = vmatpush2.msra.mxu0 0.0
    %486 = vmatprep.subr.mxu0 0.0
    %487 = vmatpush2.msra.mxu0 0.0
    %488 = vmatprep.subr.mxu0 0.0
    %489 = vmatpush2.msra.mxu0 0.0
    %490 = vmatprep.subr.mxu0 0.0
    %491 = vmatpush2.msra.mxu0 0.0
    %492 = vmatprep.subr.mxu0 0.0
    %493 = vmatpush2.msra.mxu0 0.0
    %494 = vmatprep.subr.mxu0 0.0
    %495 = vmatpush2.msra.mxu0 0.0
    %496 = vmatprep.subr.mxu0 0.0
    %497 = vmatpush2.msra.mxu0 0.0
    %498 = vmatprep.subr.mxu0 0.0
    %499 = vmatpush2.msra.mxu0 0.0
    %500 = vmatprep.subr.mxu0 0.0
    %501 = vmatpush2.msra.mxu0 0.0
    %502 = vmatprep.subr.mxu0 0.0
    %503 = vmatpush2.msra.mxu0 0.0
    %504 = vmatprep.subr.mxu0 0.0
    %505 = vmatpush2.msra.mxu0 0.0
    %506 = vmatprep.mubr.f32.mxu0 0.0
    %507 = vmatmul.mubr.f32.gmra.mxu0 %v440
    %v508 = vpop.f32.mrf.mxu0
    %v509 = vadd.f32 0.0, %v508
    %v510 = vpop.f32.mrf.mxu0
    %511 = vdwg.mxu0
    %v512 = vld [vmem:[%s4] sm:$0xff]
    %513 = vrot.lane.b32.xlu0 %v175, 120
    %v514 = vpop.permute.xlu0 %513
    %515 = vrot.lane.b32.xlu0 %v167, 120
    %v516 = vpop.permute.xlu0 %515
    %v517 = vsel %vm177, %v514, 0
    %v519 = vsel %vm177, %v516, 0
    %521 = vmatprep.subr.mxu0 0.0
    %522 = vmatpush1.xpose.msra.mxu0 0.0
    %523 = vmatprep.subr.mxu0 0.0
    %524 = vmatpush1.xpose.msra.mxu0 0.0
    %525 = vmatprep.subr.mxu0 0.0
    %526 = vmatpush1.xpose.msra.mxu0 0.0
    %527 = vmatprep.subr.mxu0 0.0
    %528 = vmatpush1.xpose.msra.mxu0 0.0
    %529 = vmatprep.subr.mxu0 0.0
    %530 = vmatpush1.xpose.msra.mxu0 0.0
    %531 = vmatprep.subr.mxu0 0.0
    %532 = vmatpush1.xpose.msra.mxu0 0.0
    %533 = vmatprep.subr.mxu0 0.0
    %534 = vmatpush1.xpose.msra.mxu0 0.0
    %535 = vmatprep.subr.mxu0 0.0
    %536 = vmatpush1.xpose.msra.mxu0 0.0
    %537 = vmatprep.subr.mxu0 0.0
    %538 = vmatpush1.xpose.msra.mxu0 0.0
    %539 = vmatprep.subr.mxu0 0.0
    %540 = vmatpush1.xpose.msra.mxu0 0.0
    %541 = vmatprep.subr.mxu0 0.0
    %542 = vmatpush1.xpose.msra.mxu0 0.0
    %543 = vmatprep.subr.mxu0 0.0
    %544 = vmatpush1.xpose.msra.mxu0 0.0
    %545 = vmatprep.subr.mxu0 0.0
    %546 = vmatpush1.xpose.msra.mxu0 0.0
    %547 = vmatprep.subr.mxu0 0.0
    %548 = vmatpush1.xpose.msra.mxu0 0.0
    %549 = vmatprep.subr.mxu0 0.0
    %550 = vmatpush1.xpose.msra.mxu0 0.0
    %551 = vmatprep.subr.mxu0 0.0
    %552 = vmatpush1.xpose.msra.mxu0 %v519
    %553 = vmatprep.subr.mxu0 0.0
    %554 = vmatpush2.xpose.msra.mxu0 0.0
    %555 = vmatprep.subr.mxu0 0.0
    %556 = vmatpush2.xpose.msra.mxu0 0.0
    %557 = vmatprep.subr.mxu0 0.0
    %558 = vmatpush2.xpose.msra.mxu0 0.0
    %559 = vmatprep.subr.mxu0 0.0
    %560 = vmatpush2.xpose.msra.mxu0 0.0
    %561 = vmatprep.subr.mxu0 0.0
    %562 = vmatpush2.xpose.msra.mxu0 0.0
    %563 = vmatprep.subr.mxu0 0.0
    %564 = vmatpush2.xpose.msra.mxu0 0.0
    %565 = vmatprep.subr.mxu0 0.0
    %566 = vmatpush2.xpose.msra.mxu0 0.0
    %567 = vmatprep.subr.mxu0 0.0
    %568 = vmatpush2.xpose.msra.mxu0 0.0
    %569 = vmatprep.subr.mxu0 0.0
    %570 = vmatpush2.xpose.msra.mxu0 0.0
    %571 = vmatprep.subr.mxu0 0.0
    %572 = vmatpush2.xpose.msra.mxu0 0.0
    %573 = vmatprep.subr.mxu0 0.0
    %574 = vmatpush2.xpose.msra.mxu0 0.0
    %575 = vmatprep.subr.mxu0 0.0
    %576 = vmatpush2.xpose.msra.mxu0 0.0
    %577 = vmatprep.subr.mxu0 0.0
    %578 = vmatpush2.xpose.msra.mxu0 0.0
    %579 = vmatprep.subr.mxu0 0.0
    %580 = vmatpush2.xpose.msra.mxu0 0.0
    %581 = vmatprep.subr.mxu0 0.0
    %582 = vmatpush2.xpose.msra.mxu0 0.0
    %583 = vmatprep.subr.mxu0 0.0
    %584 = vmatpush2.xpose.msra.mxu0 0.0
    %585 = vmatprep.mubr.f32.mxu0 0.0
    %586 = vmatmul.mubr.f32.gmra.mxu0 %v517
    %v587 = vpop.f32.mrf.mxu0
    %v588 = vadd.f32 0.0, %v587
    %v589 = vpop.f32.mrf.mxu0
    %590 = vdwg.mxu0
    %591 = vrot.lane.b32.xlu0 %v176, 120
    %v592 = vpop.permute.xlu0 %591
    %593 = vrot.lane.b32.xlu0 %v172, 120
    %v594 = vpop.permute.xlu0 %593
    %v595 = vsel %vm177, %v592, 0
    %v597 = vsel %vm177, %v594, 0
    %599 = vmatprep.subr.mxu0 0.0
    %600 = vmatpush1.xpose.msra.mxu0 0.0
    %601 = vmatprep.subr.mxu0 0.0
    %602 = vmatpush1.xpose.msra.mxu0 0.0
    %603 = vmatprep.subr.mxu0 0.0
    %604 = vmatpush1.xpose.msra.mxu0 0.0
    %605 = vmatprep.subr.mxu0 0.0
    %606 = vmatpush1.xpose.msra.mxu0 0.0
    %607 = vmatprep.subr.mxu0 0.0
    %608 = vmatpush1.xpose.msra.mxu0 0.0
    %609 = vmatprep.subr.mxu0 0.0
    %610 = vmatpush1.xpose.msra.mxu0 0.0
    %611 = vmatprep.subr.mxu0 0.0
    %612 = vmatpush1.xpose.msra.mxu0 0.0
    %613 = vmatprep.subr.mxu0 0.0
    %614 = vmatpush1.xpose.msra.mxu0 0.0
    %615 = vmatprep.subr.mxu0 0.0
    %616 = vmatpush1.xpose.msra.mxu0 0.0
    %617 = vmatprep.subr.mxu0 0.0
    %618 = vmatpush1.xpose.msra.mxu0 0.0
    %619 = vmatprep.subr.mxu0 0.0
    %620 = vmatpush1.xpose.msra.mxu0 0.0
    %621 = vmatprep.subr.mxu0 0.0
    %622 = vmatpush1.xpose.msra.mxu0 0.0
    %623 = vmatprep.subr.mxu0 0.0
    %624 = vmatpush1.xpose.msra.mxu0 0.0
    %625 = vmatprep.subr.mxu0 0.0
    %626 = vmatpush1.xpose.msra.mxu0 0.0
    %627 = vmatprep.subr.mxu0 0.0
    %628 = vmatpush1.xpose.msra.mxu0 0.0
    %629 = vmatprep.subr.mxu0 0.0
    %630 = vmatpush1.xpose.msra.mxu0 %v597
    %631 = vmatprep.subr.mxu0 0.0
    %632 = vmatpush2.xpose.msra.mxu0 0.0
    %633 = vmatprep.subr.mxu0 0.0
    %634 = vmatpush2.xpose.msra.mxu0 0.0
    %635 = vmatprep.subr.mxu0 0.0
    %636 = vmatpush2.xpose.msra.mxu0 0.0
    %637 = vmatprep.subr.mxu0 0.0
    %638 = vmatpush2.xpose.msra.mxu0 0.0
    %639 = vmatprep.subr.mxu0 0.0
    %640 = vmatpush2.xpose.msra.mxu0 0.0
    %641 = vmatprep.subr.mxu0 0.0
    %642 = vmatpush2.xpose.msra.mxu0 0.0
    %643 = vmatprep.subr.mxu0 0.0
    %644 = vmatpush2.xpose.msra.mxu0 0.0
    %645 = vmatprep.subr.mxu0 0.0
    %646 = vmatpush2.xpose.msra.mxu0 0.0
    %647 = vmatprep.subr.mxu0 0.0
    %648 = vmatpush2.xpose.msra.mxu0 0.0
    %649 = vmatprep.subr.mxu0 0.0
    %650 = vmatpush2.xpose.msra.mxu0 0.0
    %651 = vmatprep.subr.mxu0 0.0
    %652 = vmatpush2.xpose.msra.mxu0 0.0
    %653 = vmatprep.subr.mxu0 0.0
    %654 = vmatpush2.xpose.msra.mxu0 0.0
    %655 = vmatprep.subr.mxu0 0.0
    %656 = vmatpush2.xpose.msra.mxu0 0.0
    %657 = vmatprep.subr.mxu0 0.0
    %658 = vmatpush2.xpose.msra.mxu0 0.0
    %659 = vmatprep.subr.mxu0 0.0
    %660 = vmatpush2.xpose.msra.mxu0 0.0
    %661 = vmatprep.subr.mxu0 0.0
    %662 = vmatpush2.xpose.msra.mxu0 0.0
    %663 = vmatprep.mubr.f32.mxu0 0.0
    %664 = vmatmul.mubr.f32.gmra.mxu0 %v595
    %v665 = vpop.f32.mrf.mxu0
    %v666 = vadd.f32 0.0, %v665
    %v667 = vpop.f32.mrf.mxu0
    %668 = vdwg.mxu0
    %v669 = vsel %vm340, %v588, -inf
    %v670 = vsel %vm341, %v666, -inf
    %v671 = vsel %vm177, %v669, -inf
    %672 = vmax.xlane.f32.xlu0 %v671
    %v673 = vpop.xlane.xlu0 %672
    %v674 = vsel %vm177, %v670, -inf
    %675 = vmax.xlane.f32.xlu0 %v674
    %v676 = vpop.xlane.xlu0 %675
    %v677 = vsub.f32 %v669, %v673
    %v678 = vsub.f32 %v670, %v676
    %v679 = vmul.f32 %v677, 1.442695
    %v680 = vpow.pop %v679
    %v681 = vmul.f32 %v678, 1.442695
    %v682 = vpow.pop %v681
    %v683 = vsel %vm177, %v680, 0.0
    %684 = vadd.xlane.f32.xlu0 %v683
    %v685 = vpop.xlane.xlu0 %684
    %v686 = vsel %vm177, %v682, 0.0
    %687 = vadd.xlane.f32.xlu0 %v686
    %v688 = vpop.xlane.xlu0 %687
    %v689 = vrcp.pop %v685
    %v690 = vrcp.pop %v688
    %v691 = vmul.f32 %v680, %v689
    %v692 = vmul.f32 %v682, %v690
    %v695 = vsel %vm177, %v691, 0
    %697 = vmatprep.subr.mxu0 0.0
    %698 = vmatpush1.msra.mxu0 0.0
    %699 = vmatprep.subr.mxu0 0.0
    %700 = vmatpush1.msra.mxu0 0.0
    %701 = vmatprep.subr.mxu0 0.0
    %702 = vmatpush1.msra.mxu0 0.0
    %703 = vmatprep.subr.mxu0 0.0
    %704 = vmatpush1.msra.mxu0 0.0
    %705 = vmatprep.subr.mxu0 0.0
    %706 = vmatpush1.msra.mxu0 0.0
    %707 = vmatprep.subr.mxu0 0.0
    %708 = vmatpush1.msra.mxu0 0.0
    %709 = vmatprep.subr.mxu0 0.0
    %710 = vmatpush1.msra.mxu0 0.0
    %711 = vmatprep.subr.mxu0 0.0
    %712 = vmatpush1.msra.mxu0 0.0
    %713 = vmatprep.subr.mxu0 0.0
    %714 = vmatpush1.msra.mxu0 0.0
    %715 = vmatprep.subr.mxu0 0.0
    %716 = vmatpush1.msra.mxu0 0.0
    %717 = vmatprep.subr.mxu0 0.0
    %718 = vmatpush1.msra.mxu0 0.0
    %719 = vmatprep.subr.mxu0 0.0
    %720 = vmatpush1.msra.mxu0 0.0
    %721 = vmatprep.subr.mxu0 0.0
    %722 = vmatpush1.msra.mxu0 0.0
    %723 = vmatprep.subr.mxu0 0.0
    %724 = vmatpush1.msra.mxu0 0.0
    %725 = vmatprep.subr.mxu0 0.0
    %726 = vmatpush1.msra.mxu0 0.0
    %727 = vmatprep.subr.mxu0 0.0
    %728 = vmatpush1.msra.mxu0 %v516
    %729 = vmatprep.subr.mxu0 0.0
    %730 = vmatpush2.msra.mxu0 0.0
    %731 = vmatprep.subr.mxu0 0.0
    %732 = vmatpush2.msra.mxu0 0.0
    %733 = vmatprep.subr.mxu0 0.0
    %734 = vmatpush2.msra.mxu0 0.0
    %735 = vmatprep.subr.mxu0 0.0
    %736 = vmatpush2.msra.mxu0 0.0
    %737 = vmatprep.subr.mxu0 0.0
    %738 = vmatpush2.msra.mxu0 0.0
    %739 = vmatprep.subr.mxu0 0.0
    %740 = vmatpush2.msra.mxu0 0.0
    %741 = vmatprep.subr.mxu0 0.0
    %742 = vmatpush2.msra.mxu0 0.0
    %743 = vmatprep.subr.mxu0 0.0
    %744 = vmatpush2.msra.mxu0 0.0
    %745 = vmatprep.subr.mxu0 0.0
    %746 = vmatpush2.msra.mxu0 0.0
    %747 = vmatprep.subr.mxu0 0.0
    %748 = vmatpush2.msra.mxu0 0.0
    %749 = vmatprep.subr.mxu0 0.0
    %750 = vmatpush2.msra.mxu0 0.0
    %751 = vmatprep.subr.mxu0 0.0
    %752 = vmatpush2.msra.mxu0 0.0
    %753 = vmatprep.subr.mxu0 0.0
    %754 = vmatpush2.msra.mxu0 0.0
    %755 = vmatprep.subr.mxu0 0.0
    %756 = vmatpush2.msra.mxu0 0.0
    %757 = vmatprep.subr.mxu0 0.0
    %758 = vmatpush2.msra.mxu0 0.0
    %759 = vmatprep.subr.mxu0 0.0
    %760 = vmatpush2.msra.mxu0 0.0
    %761 = vmatprep.mubr.f32.mxu0 0.0
    %762 = vmatmul.mubr.f32.gmra.mxu0 %v695
    %v763 = vpop.f32.mrf.mxu0
    %v764 = vadd.f32 0.0, %v763
    %v765 = vpop.f32.mrf.mxu0
    %766 = vdwg.mxu0
    %v769 = vsel %vm177, %v692, 0
    %771 = vmatprep.subr.mxu0 0.0
    %772 = vmatpush1.msra.mxu0 0.0
    %773 = vmatprep.subr.mxu0 0.0
    %774 = vmatpush1.msra.mxu0 0.0
    %775 = vmatprep.subr.mxu0 0.0
    %776 = vmatpush1.msra.mxu0 0.0
    %777 = vmatprep.subr.mxu0 0.0
    %778 = vmatpush1.msra.mxu0 0.0
    %779 = vmatprep.subr.mxu0 0.0
    %780 = vmatpush1.msra.mxu0 0.0
    %781 = vmatprep.subr.mxu0 0.0
    %782 = vmatpush1.msra.mxu0 0.0
    %783 = vmatprep.subr.mxu0 0.0
    %784 = vmatpush1.msra.mxu0 0.0
    %785 = vmatprep.subr.mxu0 0.0
    %786 = vmatpush1.msra.mxu0 0.0
    %787 = vmatprep.subr.mxu0 0.0
    %788 = vmatpush1.msra.mxu0 0.0
    %789 = vmatprep.subr.mxu0 0.0
    %790 = vmatpush1.msra.mxu0 0.0
    %791 = vmatprep.subr.mxu0 0.0
    %792 = vmatpush1.msra.mxu0 0.0
    %793 = vmatprep.subr.mxu0 0.0
    %794 = vmatpush1.msra.mxu0 0.0
    %795 = vmatprep.subr.mxu0 0.0
    %796 = vmatpush1.msra.mxu0 0.0
    %797 = vmatprep.subr.mxu0 0.0
    %798 = vmatpush1.msra.mxu0 0.0
    %799 = vmatprep.subr.mxu0 0.0
    %800 = vmatpush1.msra.mxu0 0.0
    %801 = vmatprep.subr.mxu0 0.0
    %802 = vmatpush1.msra.mxu0 %v594
    %803 = vmatprep.subr.mxu0 0.0
    %804 = vmatpush2.msra.mxu0 0.0
    %805 = vmatprep.subr.mxu0 0.0
    %806 = vmatpush2.msra.mxu0 0.0
    %807 = vmatprep.subr.mxu0 0.0
    %808 = vmatpush2.msra.mxu0 0.0
    %809 = vmatprep.subr.mxu0 0.0
    %810 = vmatpush2.msra.mxu0 0.0
    %811 = vmatprep.subr.mxu0 0.0
    %812 = vmatpush2.msra.mxu0 0.0
    %813 = vmatprep.subr.mxu0 0.0
    %814 = vmatpush2.msra.mxu0 0.0
    %815 = vmatprep.subr.mxu0 0.0
    %816 = vmatpush2.msra.mxu0 0.0
    %817 = vmatprep.subr.mxu0 0.0
    %818 = vmatpush2.msra.mxu0 0.0
    %819 = vmatprep.subr.mxu0 0.0
    %820 = vmatpush2.msra.mxu0 0.0
    %821 = vmatprep.subr.mxu0 0.0
    %822 = vmatpush2.msra.mxu0 0.0
    %823 = vmatprep.subr.mxu0 0.0
    %824 = vmatpush2.msra.mxu0 0.0
    %825 = vmatprep.subr.mxu0 0.0
    %826 = vmatpush2.msra.mxu0 0.0
    %827 = vmatprep.subr.mxu0 0.0
    %828 = vmatpush2.msra.mxu0 0.0
    %829 = vmatprep.subr.mxu0 0.0
    %830 = vmatpush2.msra.mxu0 0.0
    %831 = vmatprep.subr.mxu0 0.0
    %832 = vmatpush2.msra.mxu0 0.0
    %833 = vmatprep.subr.mxu0 0.0
    %834 = vmatpush2.msra.mxu0 0.0
    %835 = vmatprep.mubr.f32.mxu0 0.0
    %836 = vmatmul.mubr.f32.gmra.mxu0 %v769
    %v837 = vpop.f32.mrf.mxu0
    %v838 = vadd.f32 0.0, %v837
    %v839 = vpop.f32.mrf.mxu0
    %840 = vdwg.mxu0
    %s841 = scalar_lea.vmem %s4, 8
    %v842 = vld [vmem:[%s841] sm:$0xff]
    %v844 = vsel %vm177, %v764, 0
    %v847 = vsel %vm177, %v838, 0
    %849 = vmatprep.subr.mxu0 0.0
    %850 = vmatpush1.msra.mxu0 0.0
    %851 = vmatprep.subr.mxu0 0.0
    %852 = vmatpush1.msra.mxu0 0.0
    %853 = vmatprep.subr.mxu0 0.0
    %854 = vmatpush1.msra.mxu0 0.0
    %855 = vmatprep.subr.mxu0 0.0
    %856 = vmatpush1.msra.mxu0 0.0
    %857 = vmatprep.subr.mxu0 0.0
    %858 = vmatpush1.msra.mxu0 0.0
    %859 = vmatprep.subr.mxu0 0.0
    %860 = vmatpush1.msra.mxu0 0.0
    %861 = vmatprep.subr.mxu0 0.0
    %862 = vmatpush1.msra.mxu0 0.0
    %863 = vmatprep.subr.mxu0 0.0
    %864 = vmatpush1.msra.mxu0 0.0
    %865 = vmatprep.subr.mxu0 0.0
    %866 = vmatpush1.msra.mxu0 0.0
    %867 = vmatprep.subr.mxu0 0.0
    %868 = vmatpush1.msra.mxu0 0.0
    %869 = vmatprep.subr.mxu0 0.0
    %870 = vmatpush1.msra.mxu0 0.0
    %871 = vmatprep.subr.mxu0 0.0
    %872 = vmatpush1.msra.mxu0 0.0
    %873 = vmatprep.subr.mxu0 0.0
    %874 = vmatpush1.msra.mxu0 0.0
    %875 = vmatprep.subr.mxu0 0.0
    %876 = vmatpush1.msra.mxu0 0.0
    %877 = vmatprep.subr.mxu0 0.0
    %878 = vmatpush1.msra.mxu0 0.0
    %879 = vmatprep.subr.mxu0 0.0
    %880 = vmatpush1.msra.mxu0 %v842
    %881 = vmatprep.subr.mxu0 0.0
    %882 = vmatpush2.msra.mxu0 0.0
    %883 = vmatprep.subr.mxu0 0.0
    %884 = vmatpush2.msra.mxu0 0.0
    %885 = vmatprep.subr.mxu0 0.0
    %886 = vmatpush2.msra.mxu0 0.0
    %887 = vmatprep.subr.mxu0 0.0
    %888 = vmatpush2.msra.mxu0 0.0
    %889 = vmatprep.subr.mxu0 0.0
    %890 = vmatpush2.msra.mxu0 0.0
    %891 = vmatprep.subr.mxu0 0.0
    %892 = vmatpush2.msra.mxu0 0.0
    %893 = vmatprep.subr.mxu0 0.0
    %894 = vmatpush2.msra.mxu0 0.0
    %895 = vmatprep.subr.mxu0 0.0
    %896 = vmatpush2.msra.mxu0 0.0
    %897 = vmatprep.subr.mxu0 0.0
    %898 = vmatpush2.msra.mxu0 0.0
    %899 = vmatprep.subr.mxu0 0.0
    %900 = vmatpush2.msra.mxu0 0.0
    %901 = vmatprep.subr.mxu0 0.0
    %902 = vmatpush2.msra.mxu0 0.0
    %903 = vmatprep.subr.mxu0 0.0
    %904 = vmatpush2.msra.mxu0 0.0
    %905 = vmatprep.subr.mxu0 0.0
    %906 = vmatpush2.msra.mxu0 0.0
    %907 = vmatprep.subr.mxu0 0.0
    %908 = vmatpush2.msra.mxu0 0.0
    %909 = vmatprep.subr.mxu0 0.0
    %910 = vmatpush2.msra.mxu0 0.0
    %911 = vmatprep.subr.mxu0 0.0
    %912 = vmatpush2.msra.mxu0 0.0
    %913 = vmatprep.mubr.f32.mxu0 0.0
    %914 = vmatmul.mubr.f32.gmra.mxu0 %v844
    %v915 = vpop.f32.mrf.mxu0
    %v916 = vadd.f32 0.0, %v915
    %v917 = vpop.f32.mrf.mxu0
    %918 = vmatprep.mubr.f32.mxu0 0.0
    %919 = vmatmul.mubr.f32.gmra.mxu0 %v847
    %v920 = vpop.f32.mrf.mxu0
    %v921 = vadd.f32 0.0, %v920
    %v922 = vpop.f32.mrf.mxu0
    %923 = vdwg.mxu0
    %v925 = vsel %vm177, %v436, 0
    %v928 = vsel %vm177, %v509, 0
    %930 = vmatprep.subr.mxu0 0.0
    %931 = vmatpush1.msra.mxu0 0.0
    %932 = vmatprep.subr.mxu0 0.0
    %933 = vmatpush1.msra.mxu0 0.0
    %934 = vmatprep.subr.mxu0 0.0
    %935 = vmatpush1.msra.mxu0 0.0
    %936 = vmatprep.subr.mxu0 0.0
    %937 = vmatpush1.msra.mxu0 0.0
    %938 = vmatprep.subr.mxu0 0.0
    %939 = vmatpush1.msra.mxu0 0.0
    %940 = vmatprep.subr.mxu0 0.0
    %941 = vmatpush1.msra.mxu0 0.0
    %942 = vmatprep.subr.mxu0 0.0
    %943 = vmatpush1.msra.mxu0 0.0
    %944 = vmatprep.subr.mxu0 0.0
    %945 = vmatpush1.msra.mxu0 0.0
    %946 = vmatprep.subr.mxu0 0.0
    %947 = vmatpush1.msra.mxu0 0.0
    %948 = vmatprep.subr.mxu0 0.0
    %949 = vmatpush1.msra.mxu0 0.0
    %950 = vmatprep.subr.mxu0 0.0
    %951 = vmatpush1.msra.mxu0 0.0
    %952 = vmatprep.subr.mxu0 0.0
    %953 = vmatpush1.msra.mxu0 0.0
    %954 = vmatprep.subr.mxu0 0.0
    %955 = vmatpush1.msra.mxu0 0.0
    %956 = vmatprep.subr.mxu0 0.0
    %957 = vmatpush1.msra.mxu0 0.0
    %958 = vmatprep.subr.mxu0 0.0
    %959 = vmatpush1.msra.mxu0 0.0
    %960 = vmatprep.subr.mxu0 0.0
    %961 = vmatpush1.msra.mxu0 %v512
    %962 = vmatprep.subr.mxu0 0.0
    %963 = vmatpush2.msra.mxu0 0.0
    %964 = vmatprep.subr.mxu0 0.0
    %965 = vmatpush2.msra.mxu0 0.0
    %966 = vmatprep.subr.mxu0 0.0
    %967 = vmatpush2.msra.mxu0 0.0
    %968 = vmatprep.subr.mxu0 0.0
    %969 = vmatpush2.msra.mxu0 0.0
    %970 = vmatprep.subr.mxu0 0.0
    %971 = vmatpush2.msra.mxu0 0.0
    %972 = vmatprep.subr.mxu0 0.0
    %973 = vmatpush2.msra.mxu0 0.0
    %974 = vmatprep.subr.mxu0 0.0
    %975 = vmatpush2.msra.mxu0 0.0
    %976 = vmatprep.subr.mxu0 0.0
    %977 = vmatpush2.msra.mxu0 0.0
    %978 = vmatprep.subr.mxu0 0.0
    %979 = vmatpush2.msra.mxu0 0.0
    %980 = vmatprep.subr.mxu0 0.0
    %981 = vmatpush2.msra.mxu0 0.0
    %982 = vmatprep.subr.mxu0 0.0
    %983 = vmatpush2.msra.mxu0 0.0
    %984 = vmatprep.subr.mxu0 0.0
    %985 = vmatpush2.msra.mxu0 0.0
    %986 = vmatprep.subr.mxu0 0.0
    %987 = vmatpush2.msra.mxu0 0.0
    %988 = vmatprep.subr.mxu0 0.0
    %989 = vmatpush2.msra.mxu0 0.0
    %990 = vmatprep.subr.mxu0 0.0
    %991 = vmatpush2.msra.mxu0 0.0
    %992 = vmatprep.subr.mxu0 0.0
    %993 = vmatpush2.msra.mxu0 0.0
    %994 = vmatprep.mubr.f32.mxu0 0.0
    %995 = vmatmul.mubr.f32.gmra.mxu0 %v925
    %v996 = vpop.f32.mrf.mxu0
    %v997 = vadd.f32 %v916, %v996
    %v998 = vpop.f32.mrf.mxu0
    %999 = vmatprep.mubr.f32.mxu0 0.0
    %1000 = vmatmul.mubr.f32.gmra.mxu0 %v928
    %v1001 = vpop.f32.mrf.mxu0
    %v1002 = vadd.f32 %v921, %v1001
    %v1003 = vpop.f32.mrf.mxu0
    %1004 = vdwg.mxu0
    %1005 = vrot.lane.b32.xlu0 %v175, 112
    %v1006 = vpop.permute.xlu0 %1005
    %1007 = vrot.lane.b32.xlu0 %v167, 112
    %v1008 = vpop.permute.xlu0 %1007
    %v1009 = vsel %vm177, %v1006, 0
    %v1011 = vsel %vm177, %v1008, 0
    %1013 = vmatprep.subr.mxu0 0.0
    %1014 = vmatpush1.xpose.msra.mxu0 0.0
    %1015 = vmatprep.subr.mxu0 0.0
    %1016 = vmatpush1.xpose.msra.mxu0 0.0
    %1017 = vmatprep.subr.mxu0 0.0
    %1018 = vmatpush1.xpose.msra.mxu0 0.0
    %1019 = vmatprep.subr.mxu0 0.0
    %1020 = vmatpush1.xpose.msra.mxu0 0.0
    %1021 = vmatprep.subr.mxu0 0.0
    %1022 = vmatpush1.xpose.msra.mxu0 0.0
    %1023 = vmatprep.subr.mxu0 0.0
    %1024 = vmatpush1.xpose.msra.mxu0 0.0
    %1025 = vmatprep.subr.mxu0 0.0
    %1026 = vmatpush1.xpose.msra.mxu0 0.0
    %1027 = vmatprep.subr.mxu0 0.0
    %1028 = vmatpush1.xpose.msra.mxu0 0.0
    %1029 = vmatprep.subr.mxu0 0.0
    %1030 = vmatpush1.xpose.msra.mxu0 0.0
    %1031 = vmatprep.subr.mxu0 0.0
    %1032 = vmatpush1.xpose.msra.mxu0 0.0
    %1033 = vmatprep.subr.mxu0 0.0
    %1034 = vmatpush1.xpose.msra.mxu0 0.0
    %1035 = vmatprep.subr.mxu0 0.0
    %1036 = vmatpush1.xpose.msra.mxu0 0.0
    %1037 = vmatprep.subr.mxu0 0.0
    %1038 = vmatpush1.xpose.msra.mxu0 0.0
    %1039 = vmatprep.subr.mxu0 0.0
    %1040 = vmatpush1.xpose.msra.mxu0 0.0
    %1041 = vmatprep.subr.mxu0 0.0
    %1042 = vmatpush1.xpose.msra.mxu0 0.0
    %1043 = vmatprep.subr.mxu0 0.0
    %1044 = vmatpush1.xpose.msra.mxu0 %v1011
    %1045 = vmatprep.subr.mxu0 0.0
    %1046 = vmatpush2.xpose.msra.mxu0 0.0
    %1047 = vmatprep.subr.mxu0 0.0
    %1048 = vmatpush2.xpose.msra.mxu0 0.0
    %1049 = vmatprep.subr.mxu0 0.0
    %1050 = vmatpush2.xpose.msra.mxu0 0.0
    %1051 = vmatprep.subr.mxu0 0.0
    %1052 = vmatpush2.xpose.msra.mxu0 0.0
    %1053 = vmatprep.subr.mxu0 0.0
    %1054 = vmatpush2.xpose.msra.mxu0 0.0
    %1055 = vmatprep.subr.mxu0 0.0
    %1056 = vmatpush2.xpose.msra.mxu0 0.0
    %1057 = vmatprep.subr.mxu0 0.0
    %1058 = vmatpush2.xpose.msra.mxu0 0.0
    %1059 = vmatprep.subr.mxu0 0.0
    %1060 = vmatpush2.xpose.msra.mxu0 0.0
    %1061 = vmatprep.subr.mxu0 0.0
    %1062 = vmatpush2.xpose.msra.mxu0 0.0
    %1063 = vmatprep.subr.mxu0 0.0
    %1064 = vmatpush2.xpose.msra.mxu0 0.0
    %1065 = vmatprep.subr.mxu0 0.0
    %1066 = vmatpush2.xpose.msra.mxu0 0.0
    %1067 = vmatprep.subr.mxu0 0.0
    %1068 = vmatpush2.xpose.msra.mxu0 0.0
    %1069 = vmatprep.subr.mxu0 0.0
    %1070 = vmatpush2.xpose.msra.mxu0 0.0
    %1071 = vmatprep.subr.mxu0 0.0
    %1072 = vmatpush2.xpose.msra.mxu0 0.0
    %1073 = vmatprep.subr.mxu0 0.0
    %1074 = vmatpush2.xpose.msra.mxu0 0.0
    %1075 = vmatprep.subr.mxu0 0.0
    %1076 = vmatpush2.xpose.msra.mxu0 0.0
    %1077 = vmatprep.mubr.f32.mxu0 0.0
    %1078 = vmatmul.mubr.f32.gmra.mxu0 %v1009
    %v1079 = vpop.f32.mrf.mxu0
    %v1080 = vadd.f32 0.0, %v1079
    %v1081 = vpop.f32.mrf.mxu0
    %1082 = vdwg.mxu0
    %1083 = vrot.lane.b32.xlu0 %v176, 112
    %v1084 = vpop.permute.xlu0 %1083
    %1085 = vrot.lane.b32.xlu0 %v172, 112
    %v1086 = vpop.permute.xlu0 %1085
    %v1087 = vsel %vm177, %v1084, 0
    %v1089 = vsel %vm177, %v1086, 0
    %1091 = vmatprep.subr.mxu0 0.0
    %1092 = vmatpush1.xpose.msra.mxu0 0.0
    %1093 = vmatprep.subr.mxu0 0.0
    %1094 = vmatpush1.xpose.msra.mxu0 0.0
    %1095 = vmatprep.subr.mxu0 0.0
    %1096 = vmatpush1.xpose.msra.mxu0 0.0
    %1097 = vmatprep.subr.mxu0 0.0
    %1098 = vmatpush1.xpose.msra.mxu0 0.0
    %1099 = vmatprep.subr.mxu0 0.0
    %1100 = vmatpush1.xpose.msra.mxu0 0.0
    %1101 = vmatprep.subr.mxu0 0.0
    %1102 = vmatpush1.xpose.msra.mxu0 0.0
    %1103 = vmatprep.subr.mxu0 0.0
    %1104 = vmatpush1.xpose.msra.mxu0 0.0
    %1105 = vmatprep.subr.mxu0 0.0
    %1106 = vmatpush1.xpose.msra.mxu0 0.0
    %1107 = vmatprep.subr.mxu0 0.0
    %1108 = vmatpush1.xpose.msra.mxu0 0.0
    %1109 = vmatprep.subr.mxu0 0.0
    %1110 = vmatpush1.xpose.msra.mxu0 0.0
    %1111 = vmatprep.subr.mxu0 0.0
    %1112 = vmatpush1.xpose.msra.mxu0 0.0
    %1113 = vmatprep.subr.mxu0 0.0
    %1114 = vmatpush1.xpose.msra.mxu0 0.0
    %1115 = vmatprep.subr.mxu0 0.0
    %1116 = vmatpush1.xpose.msra.mxu0 0.0
    %1117 = vmatprep.subr.mxu0 0.0
    %1118 = vmatpush1.xpose.msra.mxu0 0.0
    %1119 = vmatprep.subr.mxu0 0.0
    %1120 = vmatpush1.xpose.msra.mxu0 0.0
    %1121 = vmatprep.subr.mxu0 0.0
    %1122 = vmatpush1.xpose.msra.mxu0 %v1089
    %1123 = vmatprep.subr.mxu0 0.0
    %1124 = vmatpush2.xpose.msra.mxu0 0.0
    %1125 = vmatprep.subr.mxu0 0.0
    %1126 = vmatpush2.xpose.msra.mxu0 0.0
    %1127 = vmatprep.subr.mxu0 0.0
    %1128 = vmatpush2.xpose.msra.mxu0 0.0
    %1129 = vmatprep.subr.mxu0 0.0
    %1130 = vmatpush2.xpose.msra.mxu0 0.0
    %1131 = vmatprep.subr.mxu0 0.0
    %1132 = vmatpush2.xpose.msra.mxu0 0.0
    %1133 = vmatprep.subr.mxu0 0.0
    %1134 = vmatpush2.xpose.msra.mxu0 0.0
    %1135 = vmatprep.subr.mxu0 0.0
    %1136 = vmatpush2.xpose.msra.mxu0 0.0
    %1137 = vmatprep.subr.mxu0 0.0
    %1138 = vmatpush2.xpose.msra.mxu0 0.0
    %1139 = vmatprep.subr.mxu0 0.0
    %1140 = vmatpush2.xpose.msra.mxu0 0.0
    %1141 = vmatprep.subr.mxu0 0.0
    %1142 = vmatpush2.xpose.msra.mxu0 0.0
    %1143 = vmatprep.subr.mxu0 0.0
    %1144 = vmatpush2.xpose.msra.mxu0 0.0
    %1145 = vmatprep.subr.mxu0 0.0
    %1146 = vmatpush2.xpose.msra.mxu0 0.0
    %1147 = vmatprep.subr.mxu0 0.0
    %1148 = vmatpush2.xpose.msra.mxu0 0.0
    %1149 = vmatprep.subr.mxu0 0.0
    %1150 = vmatpush2.xpose.msra.mxu0 0.0
    %1151 = vmatprep.subr.mxu0 0.0
    %1152 = vmatpush2.xpose.msra.mxu0 0.0
    %1153 = vmatprep.subr.mxu0 0.0
    %1154 = vmatpush2.xpose.msra.mxu0 0.0
    %1155 = vmatprep.mubr.f32.mxu0 0.0
    %1156 = vmatmul.mubr.f32.gmra.mxu0 %v1087
    %v1157 = vpop.f32.mrf.mxu0
    %v1158 = vadd.f32 0.0, %v1157
    %v1159 = vpop.f32.mrf.mxu0
    %1160 = vdwg.mxu0
    %v1161 = vsel %vm340, %v1080, -inf
    %v1162 = vsel %vm341, %v1158, -inf
    %v1163 = vsel %vm177, %v1161, -inf
    %1164 = vmax.xlane.f32.xlu0 %v1163
    %v1165 = vpop.xlane.xlu0 %1164
    %v1166 = vsel %vm177, %v1162, -inf
    %1167 = vmax.xlane.f32.xlu0 %v1166
    %v1168 = vpop.xlane.xlu0 %1167
    %v1169 = vsub.f32 %v1161, %v1165
    %v1170 = vsub.f32 %v1162, %v1168
    %v1171 = vmul.f32 %v1169, 1.442695
    %v1172 = vpow.pop %v1171
    %v1173 = vmul.f32 %v1170, 1.442695
    %v1174 = vpow.pop %v1173
    %v1175 = vsel %vm177, %v1172, 0.0
    %1176 = vadd.xlane.f32.xlu0 %v1175
    %v1177 = vpop.xlane.xlu0 %1176
    %v1178 = vsel %vm177, %v1174, 0.0
    %1179 = vadd.xlane.f32.xlu0 %v1178
    %v1180 = vpop.xlane.xlu0 %1179
    %v1181 = vrcp.pop %v1177
    %v1182 = vrcp.pop %v1180
    %v1183 = vmul.f32 %v1172, %v1181
    %v1184 = vmul.f32 %v1174, %v1182
    %v1187 = vsel %vm177, %v1183, 0
    %1189 = vmatprep.subr.mxu0 0.0
    %1190 = vmatpush1.msra.mxu0 0.0
    %1191 = vmatprep.subr.mxu0 0.0
    %1192 = vmatpush1.msra.mxu0 0.0
    %1193 = vmatprep.subr.mxu0 0.0
    %1194 = vmatpush1.msra.mxu0 0.0
    %1195 = vmatprep.subr.mxu0 0.0
    %1196 = vmatpush1.msra.mxu0 0.0
    %1197 = vmatprep.subr.mxu0 0.0
    %1198 = vmatpush1.msra.mxu0 0.0
    %1199 = vmatprep.subr.mxu0 0.0
    %1200 = vmatpush1.msra.mxu0 0.0
    %1201 = vmatprep.subr.mxu0 0.0
    %1202 = vmatpush1.msra.mxu0 0.0
    %1203 = vmatprep.subr.mxu0 0.0
    %1204 = vmatpush1.msra.mxu0 0.0
    %1205 = vmatprep.subr.mxu0 0.0
    %1206 = vmatpush1.msra.mxu0 0.0
    %1207 = vmatprep.subr.mxu0 0.0
    %1208 = vmatpush1.msra.mxu0 0.0
    %1209 = vmatprep.subr.mxu0 0.0
    %1210 = vmatpush1.msra.mxu0 0.0
    %1211 = vmatprep.subr.mxu0 0.0
    %1212 = vmatpush1.msra.mxu0 0.0
    %1213 = vmatprep.subr.mxu0 0.0
    %1214 = vmatpush1.msra.mxu0 0.0
    %1215 = vmatprep.subr.mxu0 0.0
    %1216 = vmatpush1.msra.mxu0 0.0
    %1217 = vmatprep.subr.mxu0 0.0
    %1218 = vmatpush1.msra.mxu0 0.0
    %1219 = vmatprep.subr.mxu0 0.0
    %1220 = vmatpush1.msra.mxu0 %v1008
    %1221 = vmatprep.subr.mxu0 0.0
    %1222 = vmatpush2.msra.mxu0 0.0
    %1223 = vmatprep.subr.mxu0 0.0
    %1224 = vmatpush2.msra.mxu0 0.0
    %1225 = vmatprep.subr.mxu0 0.0
    %1226 = vmatpush2.msra.mxu0 0.0
    %1227 = vmatprep.subr.mxu0 0.0
    %1228 = vmatpush2.msra.mxu0 0.0
    %1229 = vmatprep.subr.mxu0 0.0
    %1230 = vmatpush2.msra.mxu0 0.0
    %1231 = vmatprep.subr.mxu0 0.0
    %1232 = vmatpush2.msra.mxu0 0.0
    %1233 = vmatprep.subr.mxu0 0.0
    %1234 = vmatpush2.msra.mxu0 0.0
    %1235 = vmatprep.subr.mxu0 0.0
    %1236 = vmatpush2.msra.mxu0 0.0
    %1237 = vmatprep.subr.mxu0 0.0
    %1238 = vmatpush2.msra.mxu0 0.0
    %1239 = vmatprep.subr.mxu0 0.0
    %1240 = vmatpush2.msra.mxu0 0.0
    %1241 = vmatprep.subr.mxu0 0.0
    %1242 = vmatpush2.msra.mxu0 0.0
    %1243 = vmatprep.subr.mxu0 0.0
    %1244 = vmatpush2.msra.mxu0 0.0
    %1245 = vmatprep.subr.mxu0 0.0
    %1246 = vmatpush2.msra.mxu0 0.0
    %1247 = vmatprep.subr.mxu0 0.0
    %1248 = vmatpush2.msra.mxu0 0.0
    %1249 = vmatprep.subr.mxu0 0.0
    %1250 = vmatpush2.msra.mxu0 0.0
    %1251 = vmatprep.subr.mxu0 0.0
    %1252 = vmatpush2.msra.mxu0 0.0
    %1253 = vmatprep.mubr.f32.mxu0 0.0
    %1254 = vmatmul.mubr.f32.gmra.mxu0 %v1187
    %v1255 = vpop.f32.mrf.mxu0
    %v1256 = vadd.f32 0.0, %v1255
    %v1257 = vpop.f32.mrf.mxu0
    %1258 = vdwg.mxu0
    %v1261 = vsel %vm177, %v1184, 0
    %1263 = vmatprep.subr.mxu0 0.0
    %1264 = vmatpush1.msra.mxu0 0.0
    %1265 = vmatprep.subr.mxu0 0.0
    %1266 = vmatpush1.msra.mxu0 0.0
    %1267 = vmatprep.subr.mxu0 0.0
    %1268 = vmatpush1.msra.mxu0 0.0
    %1269 = vmatprep.subr.mxu0 0.0
    %1270 = vmatpush1.msra.mxu0 0.0
    %1271 = vmatprep.subr.mxu0 0.0
    %1272 = vmatpush1.msra.mxu0 0.0
    %1273 = vmatprep.subr.mxu0 0.0
    %1274 = vmatpush1.msra.mxu0 0.0
    %1275 = vmatprep.subr.mxu0 0.0
    %1276 = vmatpush1.msra.mxu0 0.0
    %1277 = vmatprep.subr.mxu0 0.0
    %1278 = vmatpush1.msra.mxu0 0.0
    %1279 = vmatprep.subr.mxu0 0.0
    %1280 = vmatpush1.msra.mxu0 0.0
    %1281 = vmatprep.subr.mxu0 0.0
    %1282 = vmatpush1.msra.mxu0 0.0
    %1283 = vmatprep.subr.mxu0 0.0
    %1284 = vmatpush1.msra.mxu0 0.0
    %1285 = vmatprep.subr.mxu0 0.0
    %1286 = vmatpush1.msra.mxu0 0.0
    %1287 = vmatprep.subr.mxu0 0.0
    %1288 = vmatpush1.msra.mxu0 0.0
    %1289 = vmatprep.subr.mxu0 0.0
    %1290 = vmatpush1.msra.mxu0 0.0
    %1291 = vmatprep.subr.mxu0 0.0
    %1292 = vmatpush1.msra.mxu0 0.0
    %1293 = vmatprep.subr.mxu0 0.0
    %1294 = vmatpush1.msra.mxu0 %v1086
    %1295 = vmatprep.subr.mxu0 0.0
    %1296 = vmatpush2.msra.mxu0 0.0
    %1297 = vmatprep.subr.mxu0 0.0
    %1298 = vmatpush2.msra.mxu0 0.0
    %1299 = vmatprep.subr.mxu0 0.0
    %1300 = vmatpush2.msra.mxu0 0.0
    %1301 = vmatprep.subr.mxu0 0.0
    %1302 = vmatpush2.msra.mxu0 0.0
    %1303 = vmatprep.subr.mxu0 0.0
    %1304 = vmatpush2.msra.mxu0 0.0
    %1305 = vmatprep.subr.mxu0 0.0
    %1306 = vmatpush2.msra.mxu0 0.0
    %1307 = vmatprep.subr.mxu0 0.0
    %1308 = vmatpush2.msra.mxu0 0.0
    %1309 = vmatprep.subr.mxu0 0.0
    %1310 = vmatpush2.msra.mxu0 0.0
    %1311 = vmatprep.subr.mxu0 0.0
    %1312 = vmatpush2.msra.mxu0 0.0
    %1313 = vmatprep.subr.mxu0 0.0
    %1314 = vmatpush2.msra.mxu0 0.0
    %1315 = vmatprep.subr.mxu0 0.0
    %1316 = vmatpush2.msra.mxu0 0.0
    %1317 = vmatprep.subr.mxu0 0.0
    %1318 = vmatpush2.msra.mxu0 0.0
    %1319 = vmatprep.subr.mxu0 0.0
    %1320 = vmatpush2.msra.mxu0 0.0
    %1321 = vmatprep.subr.mxu0 0.0
    %1322 = vmatpush2.msra.mxu0 0.0
    %1323 = vmatprep.subr.mxu0 0.0
    %1324 = vmatpush2.msra.mxu0 0.0
    %1325 = vmatprep.subr.mxu0 0.0
    %1326 = vmatpush2.msra.mxu0 0.0
    %1327 = vmatprep.mubr.f32.mxu0 0.0
    %1328 = vmatmul.mubr.f32.gmra.mxu0 %v1261
    %v1329 = vpop.f32.mrf.mxu0
    %v1330 = vadd.f32 0.0, %v1329
    %v1331 = vpop.f32.mrf.mxu0
    %1332 = vdwg.mxu0
    %s1333 = scalar_lea.vmem %s4, 16
    %v1334 = vld [vmem:[%s1333] sm:$0xff]
    %v1336 = vsel %vm177, %v1256, 0
    %v1339 = vsel %vm177, %v1330, 0
    %1341 = vmatprep.subr.mxu0 0.0
    %1342 = vmatpush1.msra.mxu0 0.0
    %1343 = vmatprep.subr.mxu0 0.0
    %1344 = vmatpush1.msra.mxu0 0.0
    %1345 = vmatprep.subr.mxu0 0.0
    %1346 = vmatpush1.msra.mxu0 0.0
    %1347 = vmatprep.subr.mxu0 0.0
    %1348 = vmatpush1.msra.mxu0 0.0
    %1349 = vmatprep.subr.mxu0 0.0
    %1350 = vmatpush1.msra.mxu0 0.0
    %1351 = vmatprep.subr.mxu0 0.0
    %1352 = vmatpush1.msra.mxu0 0.0
    %1353 = vmatprep.subr.mxu0 0.0
    %1354 = vmatpush1.msra.mxu0 0.0
    %1355 = vmatprep.subr.mxu0 0.0
    %1356 = vmatpush1.msra.mxu0 0.0
    %1357 = vmatprep.subr.mxu0 0.0
    %1358 = vmatpush1.msra.mxu0 0.0
    %1359 = vmatprep.subr.mxu0 0.0
    %1360 = vmatpush1.msra.mxu0 0.0
    %1361 = vmatprep.subr.mxu0 0.0
    %1362 = vmatpush1.msra.mxu0 0.0
    %1363 = vmatprep.subr.mxu0 0.0
    %1364 = vmatpush1.msra.mxu0 0.0
    %1365 = vmatprep.subr.mxu0 0.0
    %1366 = vmatpush1.msra.mxu0 0.0
    %1367 = vmatprep.subr.mxu0 0.0
    %1368 = vmatpush1.msra.mxu0 0.0
    %1369 = vmatprep.subr.mxu0 0.0
    %1370 = vmatpush1.msra.mxu0 0.0
    %1371 = vmatprep.subr.mxu0 0.0
    %1372 = vmatpush1.msra.mxu0 %v1334
    %1373 = vmatprep.subr.mxu0 0.0
    %1374 = vmatpush2.msra.mxu0 0.0
    %1375 = vmatprep.subr.mxu0 0.0
    %1376 = vmatpush2.msra.mxu0 0.0
    %1377 = vmatprep.subr.mxu0 0.0
    %1378 = vmatpush2.msra.mxu0 0.0
    %1379 = vmatprep.subr.mxu0 0.0
    %1380 = vmatpush2.msra.mxu0 0.0
    %1381 = vmatprep.subr.mxu0 0.0
    %1382 = vmatpush2.msra.mxu0 0.0
    %1383 = vmatprep.subr.mxu0 0.0
    %1384 = vmatpush2.msra.mxu0 0.0
    %1385 = vmatprep.subr.mxu0 0.0
    %1386 = vmatpush2.msra.mxu0 0.0
    %1387 = vmatprep.subr.mxu0 0.0
    %1388 = vmatpush2.msra.mxu0 0.0
    %1389 = vmatprep.subr.mxu0 0.0
    %1390 = vmatpush2.msra.mxu0 0.0
    %1391 = vmatprep.subr.mxu0 0.0
    %1392 = vmatpush2.msra.mxu0 0.0
    %1393 = vmatprep.subr.mxu0 0.0
    %1394 = vmatpush2.msra.mxu0 0.0
    %1395 = vmatprep.subr.mxu0 0.0
    %1396 = vmatpush2.msra.mxu0 0.0
    %1397 = vmatprep.subr.mxu0 0.0
    %1398 = vmatpush2.msra.mxu0 0.0
    %1399 = vmatprep.subr.mxu0 0.0
    %1400 = vmatpush2.msra.mxu0 0.0
    %1401 = vmatprep.subr.mxu0 0.0
    %1402 = vmatpush2.msra.mxu0 0.0
    %1403 = vmatprep.subr.mxu0 0.0
    %1404 = vmatpush2.msra.mxu0 0.0
    %1405 = vmatprep.mubr.f32.mxu0 0.0
    %1406 = vmatmul.mubr.f32.gmra.mxu0 %v1336
    %v1407 = vpop.f32.mrf.mxu0
    %v1408 = vadd.f32 0.0, %v1407
    %v1409 = vpop.f32.mrf.mxu0
    %1410 = vmatprep.mubr.f32.mxu0 0.0
    %1411 = vmatmul.mubr.f32.gmra.mxu0 %v1339
    %v1412 = vpop.f32.mrf.mxu0
    %v1413 = vadd.f32 0.0, %v1412
    %v1414 = vpop.f32.mrf.mxu0
    %1415 = vdwg.mxu0
    %v1416 = vadd.f32 %v997, %v1408
    %v1417 = vadd.f32 %v1002, %v1413
    %1418 = vrot.lane.b32.xlu0 %v175, 104
    %v1419 = vpop.permute.xlu0 %1418
    %1420 = vrot.lane.b32.xlu0 %v167, 104
    %v1421 = vpop.permute.xlu0 %1420
    %v1422 = vsel %vm177, %v1419, 0
    %v1424 = vsel %vm177, %v1421, 0
    %1426 = vmatprep.subr.mxu0 0.0
    %1427 = vmatpush1.xpose.msra.mxu0 0.0
    %1428 = vmatprep.subr.mxu0 0.0
    %1429 = vmatpush1.xpose.msra.mxu0 0.0
    %1430 = vmatprep.subr.mxu0 0.0
    %1431 = vmatpush1.xpose.msra.mxu0 0.0
    %1432 = vmatprep.subr.mxu0 0.0
    %1433 = vmatpush1.xpose.msra.mxu0 0.0
    %1434 = vmatprep.subr.mxu0 0.0
    %1435 = vmatpush1.xpose.msra.mxu0 0.0
    %1436 = vmatprep.subr.mxu0 0.0
    %1437 = vmatpush1.xpose.msra.mxu0 0.0
    %1438 = vmatprep.subr.mxu0 0.0
    %1439 = vmatpush1.xpose.msra.mxu0 0.0
    %1440 = vmatprep.subr.mxu0 0.0
    %1441 = vmatpush1.xpose.msra.mxu0 0.0
    %1442 = vmatprep.subr.mxu0 0.0
    %1443 = vmatpush1.xpose.msra.mxu0 0.0
    %1444 = vmatprep.subr.mxu0 0.0
    %1445 = vmatpush1.xpose.msra.mxu0 0.0
    %1446 = vmatprep.subr.mxu0 0.0
    %1447 = vmatpush1.xpose.msra.mxu0 0.0
    %1448 = vmatprep.subr.mxu0 0.0
    %1449 = vmatpush1.xpose.msra.mxu0 0.0
    %1450 = vmatprep.subr.mxu0 0.0
    %1451 = vmatpush1.xpose.msra.mxu0 0.0
    %1452 = vmatprep.subr.mxu0 0.0
    %1453 = vmatpush1.xpose.msra.mxu0 0.0
    %1454 = vmatprep.subr.mxu0 0.0
    %1455 = vmatpush1.xpose.msra.mxu0 0.0
    %1456 = vmatprep.subr.mxu0 0.0
    %1457 = vmatpush1.xpose.msra.mxu0 %v1424
    %1458 = vmatprep.subr.mxu0 0.0
    %1459 = vmatpush2.xpose.msra.mxu0 0.0
    %1460 = vmatprep.subr.mxu0 0.0
    %1461 = vmatpush2.xpose.msra.mxu0 0.0
    %1462 = vmatprep.subr.mxu0 0.0
    %1463 = vmatpush2.xpose.msra.mxu0 0.0
    %1464 = vmatprep.subr.mxu0 0.0
    %1465 = vmatpush2.xpose.msra.mxu0 0.0
    %1466 = vmatprep.subr.mxu0 0.0
    %1467 = vmatpush2.xpose.msra.mxu0 0.0
    %1468 = vmatprep.subr.mxu0 0.0
    %1469 = vmatpush2.xpose.msra.mxu0 0.0
    %1470 = vmatprep.subr.mxu0 0.0
    %1471 = vmatpush2.xpose.msra.mxu0 0.0
    %1472 = vmatprep.subr.mxu0 0.0
    %1473 = vmatpush2.xpose.msra.mxu0 0.0
    %1474 = vmatprep.subr.mxu0 0.0
    %1475 = vmatpush2.xpose.msra.mxu0 0.0
    %1476 = vmatprep.subr.mxu0 0.0
    %1477 = vmatpush2.xpose.msra.mxu0 0.0
    %1478 = vmatprep.subr.mxu0 0.0
    %1479 = vmatpush2.xpose.msra.mxu0 0.0
    %1480 = vmatprep.subr.mxu0 0.0
    %1481 = vmatpush2.xpose.msra.mxu0 0.0
    %1482 = vmatprep.subr.mxu0 0.0
    %1483 = vmatpush2.xpose.msra.mxu0 0.0
    %1484 = vmatprep.subr.mxu0 0.0
    %1485 = vmatpush2.xpose.msra.mxu0 0.0
    %1486 = vmatprep.subr.mxu0 0.0
    %1487 = vmatpush2.xpose.msra.mxu0 0.0
    %1488 = vmatprep.subr.mxu0 0.0
    %1489 = vmatpush2.xpose.msra.mxu0 0.0
    %1490 = vmatprep.mubr.f32.mxu0 0.0
    %1491 = vmatmul.mubr.f32.gmra.mxu0 %v1422
    %v1492 = vpop.f32.mrf.mxu0
    %v1493 = vadd.f32 0.0, %v1492
    %v1494 = vpop.f32.mrf.mxu0
    %1495 = vdwg.mxu0
    %1496 = vrot.lane.b32.xlu0 %v176, 104
    %v1497 = vpop.permute.xlu0 %1496
    %1498 = vrot.lane.b32.xlu0 %v172, 104
    %v1499 = vpop.permute.xlu0 %1498
    %v1500 = vsel %vm177, %v1497, 0
    %v1502 = vsel %vm177, %v1499, 0
    %1504 = vmatprep.subr.mxu0 0.0
    %1505 = vmatpush1.xpose.msra.mxu0 0.0
    %1506 = vmatprep.subr.mxu0 0.0
    %1507 = vmatpush1.xpose.msra.mxu0 0.0
    %1508 = vmatprep.subr.mxu0 0.0
    %1509 = vmatpush1.xpose.msra.mxu0 0.0
    %1510 = vmatprep.subr.mxu0 0.0
    %1511 = vmatpush1.xpose.msra.mxu0 0.0
    %1512 = vmatprep.subr.mxu0 0.0
    %1513 = vmatpush1.xpose.msra.mxu0 0.0
    %1514 = vmatprep.subr.mxu0 0.0
    %1515 = vmatpush1.xpose.msra.mxu0 0.0
    %1516 = vmatprep.subr.mxu0 0.0
    %1517 = vmatpush1.xpose.msra.mxu0 0.0
    %1518 = vmatprep.subr.mxu0 0.0
    %1519 = vmatpush1.xpose.msra.mxu0 0.0
    %1520 = vmatprep.subr.mxu0 0.0
    %1521 = vmatpush1.xpose.msra.mxu0 0.0
    %1522 = vmatprep.subr.mxu0 0.0
    %1523 = vmatpush1.xpose.msra.mxu0 0.0
    %1524 = vmatprep.subr.mxu0 0.0
    %1525 = vmatpush1.xpose.msra.mxu0 0.0
    %1526 = vmatprep.subr.mxu0 0.0
    %1527 = vmatpush1.xpose.msra.mxu0 0.0
    %1528 = vmatprep.subr.mxu0 0.0
    %1529 = vmatpush1.xpose.msra.mxu0 0.0
    %1530 = vmatprep.subr.mxu0 0.0
    %1531 = vmatpush1.xpose.msra.mxu0 0.0
    %1532 = vmatprep.subr.mxu0 0.0
    %1533 = vmatpush1.xpose.msra.mxu0 0.0
    %1534 = vmatprep.subr.mxu0 0.0
    %1535 = vmatpush1.xpose.msra.mxu0 %v1502
    %1536 = vmatprep.subr.mxu0 0.0
    %1537 = vmatpush2.xpose.msra.mxu0 0.0
    %1538 = vmatprep.subr.mxu0 0.0
    %1539 = vmatpush2.xpose.msra.mxu0 0.0
    %1540 = vmatprep.subr.mxu0 0.0
    %1541 = vmatpush2.xpose.msra.mxu0 0.0
    %1542 = vmatprep.subr.mxu0 0.0
    %1543 = vmatpush2.xpose.msra.mxu0 0.0
    %1544 = vmatprep.subr.mxu0 0.0
    %1545 = vmatpush2.xpose.msra.mxu0 0.0
    %1546 = vmatprep.subr.mxu0 0.0
    %1547 = vmatpush2.xpose.msra.mxu0 0.0
    %1548 = vmatprep.subr.mxu0 0.0
    %1549 = vmatpush2.xpose.msra.mxu0 0.0
    %1550 = vmatprep.subr.mxu0 0.0
    %1551 = vmatpush2.xpose.msra.mxu0 0.0
    %1552 = vmatprep.subr.mxu0 0.0
    %1553 = vmatpush2.xpose.msra.mxu0 0.0
    %1554 = vmatprep.subr.mxu0 0.0
    %1555 = vmatpush2.xpose.msra.mxu0 0.0
    %1556 = vmatprep.subr.mxu0 0.0
    %1557 = vmatpush2.xpose.msra.mxu0 0.0
    %1558 = vmatprep.subr.mxu0 0.0
    %1559 = vmatpush2.xpose.msra.mxu0 0.0
    %1560 = vmatprep.subr.mxu0 0.0
    %1561 = vmatpush2.xpose.msra.mxu0 0.0
    %1562 = vmatprep.subr.mxu0 0.0
    %1563 = vmatpush2.xpose.msra.mxu0 0.0
    %1564 = vmatprep.subr.mxu0 0.0
    %1565 = vmatpush2.xpose.msra.mxu0 0.0
    %1566 = vmatprep.subr.mxu0 0.0
    %1567 = vmatpush2.xpose.msra.mxu0 0.0
    %1568 = vmatprep.mubr.f32.mxu0 0.0
    %1569 = vmatmul.mubr.f32.gmra.mxu0 %v1500
    %v1570 = vpop.f32.mrf.mxu0
    %v1571 = vadd.f32 0.0, %v1570
    %v1572 = vpop.f32.mrf.mxu0
    %1573 = vdwg.mxu0
    %v1574 = vsel %vm340, %v1493, -inf
    %v1575 = vsel %vm341, %v1571, -inf
    %v1576 = vsel %vm177, %v1574, -inf
    %1577 = vmax.xlane.f32.xlu0 %v1576
    %v1578 = vpop.xlane.xlu0 %1577
    %v1579 = vsel %vm177, %v1575, -inf
    %1580 = vmax.xlane.f32.xlu0 %v1579
    %v1581 = vpop.xlane.xlu0 %1580
    %v1582 = vsub.f32 %v1574, %v1578
    %v1583 = vsub.f32 %v1575, %v1581
    %v1584 = vmul.f32 %v1582, 1.442695
    %v1585 = vpow.pop %v1584
    %v1586 = vmul.f32 %v1583, 1.442695
    %v1587 = vpow.pop %v1586
    %v1588 = vsel %vm177, %v1585, 0.0
    %1589 = vadd.xlane.f32.xlu0 %v1588
    %v1590 = vpop.xlane.xlu0 %1589
    %v1591 = vsel %vm177, %v1587, 0.0
    %1592 = vadd.xlane.f32.xlu0 %v1591
    %v1593 = vpop.xlane.xlu0 %1592
    %v1594 = vrcp.pop %v1590
    %v1595 = vrcp.pop %v1593
    %v1596 = vmul.f32 %v1585, %v1594
    %v1597 = vmul.f32 %v1587, %v1595
    %v1600 = vsel %vm177, %v1596, 0
    %1602 = vmatprep.subr.mxu0 0.0
    %1603 = vmatpush1.msra.mxu0 0.0
    %1604 = vmatprep.subr.mxu0 0.0
    %1605 = vmatpush1.msra.mxu0 0.0
    %1606 = vmatprep.subr.mxu0 0.0
    %1607 = vmatpush1.msra.mxu0 0.0
    %1608 = vmatprep.subr.mxu0 0.0
    %1609 = vmatpush1.msra.mxu0 0.0
    %1610 = vmatprep.subr.mxu0 0.0
    %1611 = vmatpush1.msra.mxu0 0.0
    %1612 = vmatprep.subr.mxu0 0.0
    %1613 = vmatpush1.msra.mxu0 0.0
    %1614 = vmatprep.subr.mxu0 0.0
    %1615 = vmatpush1.msra.mxu0 0.0
    %1616 = vmatprep.subr.mxu0 0.0
    %1617 = vmatpush1.msra.mxu0 0.0
    %1618 = vmatprep.subr.mxu0 0.0
    %1619 = vmatpush1.msra.mxu0 0.0
    %1620 = vmatprep.subr.mxu0 0.0
    %1621 = vmatpush1.msra.mxu0 0.0
    %1622 = vmatprep.subr.mxu0 0.0
    %1623 = vmatpush1.msra.mxu0 0.0
    %1624 = vmatprep.subr.mxu0 0.0
    %1625 = vmatpush1.msra.mxu0 0.0
    %1626 = vmatprep.subr.mxu0 0.0
    %1627 = vmatpush1.msra.mxu0 0.0
    %1628 = vmatprep.subr.mxu0 0.0
    %1629 = vmatpush1.msra.mxu0 0.0
    %1630 = vmatprep.subr.mxu0 0.0
    %1631 = vmatpush1.msra.mxu0 0.0
    %1632 = vmatprep.subr.mxu0 0.0
    %1633 = vmatpush1.msra.mxu0 %v1421
    %1634 = vmatprep.subr.mxu0 0.0
    %1635 = vmatpush2.msra.mxu0 0.0
    %1636 = vmatprep.subr.mxu0 0.0
    %1637 = vmatpush2.msra.mxu0 0.0
    %1638 = vmatprep.subr.mxu0 0.0
    %1639 = vmatpush2.msra.mxu0 0.0
    %1640 = vmatprep.subr.mxu0 0.0
    %1641 = vmatpush2.msra.mxu0 0.0
    %1642 = vmatprep.subr.mxu0 0.0
    %1643 = vmatpush2.msra.mxu0 0.0
    %1644 = vmatprep.subr.mxu0 0.0
    %1645 = vmatpush2.msra.mxu0 0.0
    %1646 = vmatprep.subr.mxu0 0.0
    %1647 = vmatpush2.msra.mxu0 0.0
    %1648 = vmatprep.subr.mxu0 0.0
    %1649 = vmatpush2.msra.mxu0 0.0
    %1650 = vmatprep.subr.mxu0 0.0
    %1651 = vmatpush2.msra.mxu0 0.0
    %1652 = vmatprep.subr.mxu0 0.0
    %1653 = vmatpush2.msra.mxu0 0.0
    %1654 = vmatprep.subr.mxu0 0.0
    %1655 = vmatpush2.msra.mxu0 0.0
    %1656 = vmatprep.subr.mxu0 0.0
    %1657 = vmatpush2.msra.mxu0 0.0
    %1658 = vmatprep.subr.mxu0 0.0
    %1659 = vmatpush2.msra.mxu0 0.0
    %1660 = vmatprep.subr.mxu0 0.0
    %1661 = vmatpush2.msra.mxu0 0.0
    %1662 = vmatprep.subr.mxu0 0.0
    %1663 = vmatpush2.msra.mxu0 0.0
    %1664 = vmatprep.subr.mxu0 0.0
    %1665 = vmatpush2.msra.mxu0 0.0
    %1666 = vmatprep.mubr.f32.mxu0 0.0
    %1667 = vmatmul.mubr.f32.gmra.mxu0 %v1600
    %v1668 = vpop.f32.mrf.mxu0
    %v1669 = vadd.f32 0.0, %v1668
    %v1670 = vpop.f32.mrf.mxu0
    %1671 = vdwg.mxu0
    %v1674 = vsel %vm177, %v1597, 0
    %1676 = vmatprep.subr.mxu0 0.0
    %1677 = vmatpush1.msra.mxu0 0.0
    %1678 = vmatprep.subr.mxu0 0.0
    %1679 = vmatpush1.msra.mxu0 0.0
    %1680 = vmatprep.subr.mxu0 0.0
    %1681 = vmatpush1.msra.mxu0 0.0
    %1682 = vmatprep.subr.mxu0 0.0
    %1683 = vmatpush1.msra.mxu0 0.0
    %1684 = vmatprep.subr.mxu0 0.0
    %1685 = vmatpush1.msra.mxu0 0.0
    %1686 = vmatprep.subr.mxu0 0.0
    %1687 = vmatpush1.msra.mxu0 0.0
    %1688 = vmatprep.subr.mxu0 0.0
    %1689 = vmatpush1.msra.mxu0 0.0
    %1690 = vmatprep.subr.mxu0 0.0
    %1691 = vmatpush1.msra.mxu0 0.0
    %1692 = vmatprep.subr.mxu0 0.0
    %1693 = vmatpush1.msra.mxu0 0.0
    %1694 = vmatprep.subr.mxu0 0.0
    %1695 = vmatpush1.msra.mxu0 0.0
    %1696 = vmatprep.subr.mxu0 0.0
    %1697 = vmatpush1.msra.mxu0 0.0
    %1698 = vmatprep.subr.mxu0 0.0
    %1699 = vmatpush1.msra.mxu0 0.0
    %1700 = vmatprep.subr.mxu0 0.0
    %1701 = vmatpush1.msra.mxu0 0.0
    %1702 = vmatprep.subr.mxu0 0.0
    %1703 = vmatpush1.msra.mxu0 0.0
    %1704 = vmatprep.subr.mxu0 0.0
    %1705 = vmatpush1.msra.mxu0 0.0
    %1706 = vmatprep.subr.mxu0 0.0
    %1707 = vmatpush1.msra.mxu0 %v1499
    %1708 = vmatprep.subr.mxu0 0.0
    %1709 = vmatpush2.msra.mxu0 0.0
    %1710 = vmatprep.subr.mxu0 0.0
    %1711 = vmatpush2.msra.mxu0 0.0
    %1712 = vmatprep.subr.mxu0 0.0
    %1713 = vmatpush2.msra.mxu0 0.0
    %1714 = vmatprep.subr.mxu0 0.0
    %1715 = vmatpush2.msra.mxu0 0.0
    %1716 = vmatprep.subr.mxu0 0.0
    %1717 = vmatpush2.msra.mxu0 0.0
    %1718 = vmatprep.subr.mxu0 0.0
    %1719 = vmatpush2.msra.mxu0 0.0
    %1720 = vmatprep.subr.mxu0 0.0
    %1721 = vmatpush2.msra.mxu0 0.0
    %1722 = vmatprep.subr.mxu0 0.0
    %1723 = vmatpush2.msra.mxu0 0.0
    %1724 = vmatprep.subr.mxu0 0.0
    %1725 = vmatpush2.msra.mxu0 0.0
    %1726 = vmatprep.subr.mxu0 0.0
    %1727 = vmatpush2.msra.mxu0 0.0
    %1728 = vmatprep.subr.mxu0 0.0
    %1729 = vmatpush2.msra.mxu0 0.0
    %1730 = vmatprep.subr.mxu0 0.0
    %1731 = vmatpush2.msra.mxu0 0.0
    %1732 = vmatprep.subr.mxu0 0.0
    %1733 = vmatpush2.msra.mxu0 0.0
    %1734 = vmatprep.subr.mxu0 0.0
    %1735 = vmatpush2.msra.mxu0 0.0
    %1736 = vmatprep.subr.mxu0 0.0
    %1737 = vmatpush2.msra.mxu0 0.0
    %1738 = vmatprep.subr.mxu0 0.0
    %1739 = vmatpush2.msra.mxu0 0.0
    %1740 = vmatprep.mubr.f32.mxu0 0.0
    %1741 = vmatmul.mubr.f32.gmra.mxu0 %v1674
    %v1742 = vpop.f32.mrf.mxu0
    %v1743 = vadd.f32 0.0, %v1742
    %v1744 = vpop.f32.mrf.mxu0
    %1745 = vdwg.mxu0
    %s1746 = scalar_lea.vmem %s4, 24
    %v1747 = vld [vmem:[%s1746] sm:$0xff]
    %v1749 = vsel %vm177, %v1669, 0
    %v1752 = vsel %vm177, %v1743, 0
    %1754 = vmatprep.subr.mxu0 0.0
    %1755 = vmatpush1.msra.mxu0 0.0
    %1756 = vmatprep.subr.mxu0 0.0
    %1757 = vmatpush1.msra.mxu0 0.0
    %1758 = vmatprep.subr.mxu0 0.0
    %1759 = vmatpush1.msra.mxu0 0.0
    %1760 = vmatprep.subr.mxu0 0.0
    %1761 = vmatpush1.msra.mxu0 0.0
    %1762 = vmatprep.subr.mxu0 0.0
    %1763 = vmatpush1.msra.mxu0 0.0
    %1764 = vmatprep.subr.mxu0 0.0
    %1765 = vmatpush1.msra.mxu0 0.0
    %1766 = vmatprep.subr.mxu0 0.0
    %1767 = vmatpush1.msra.mxu0 0.0
    %1768 = vmatprep.subr.mxu0 0.0
    %1769 = vmatpush1.msra.mxu0 0.0
    %1770 = vmatprep.subr.mxu0 0.0
    %1771 = vmatpush1.msra.mxu0 0.0
    %1772 = vmatprep.subr.mxu0 0.0
    %1773 = vmatpush1.msra.mxu0 0.0
    %1774 = vmatprep.subr.mxu0 0.0
    %1775 = vmatpush1.msra.mxu0 0.0
    %1776 = vmatprep.subr.mxu0 0.0
    %1777 = vmatpush1.msra.mxu0 0.0
    %1778 = vmatprep.subr.mxu0 0.0
    %1779 = vmatpush1.msra.mxu0 0.0
    %1780 = vmatprep.subr.mxu0 0.0
    %1781 = vmatpush1.msra.mxu0 0.0
    %1782 = vmatprep.subr.mxu0 0.0
    %1783 = vmatpush1.msra.mxu0 0.0
    %1784 = vmatprep.subr.mxu0 0.0
    %1785 = vmatpush1.msra.mxu0 %v1747
    %1786 = vmatprep.subr.mxu0 0.0
    %1787 = vmatpush2.msra.mxu0 0.0
    %1788 = vmatprep.subr.mxu0 0.0
    %1789 = vmatpush2.msra.mxu0 0.0
    %1790 = vmatprep.subr.mxu0 0.0
    %1791 = vmatpush2.msra.mxu0 0.0
    %1792 = vmatprep.subr.mxu0 0.0
    %1793 = vmatpush2.msra.mxu0 0.0
    %1794 = vmatprep.subr.mxu0 0.0
    %1795 = vmatpush2.msra.mxu0 0.0
    %1796 = vmatprep.subr.mxu0 0.0
    %1797 = vmatpush2.msra.mxu0 0.0
    %1798 = vmatprep.subr.mxu0 0.0
    %1799 = vmatpush2.msra.mxu0 0.0
    %1800 = vmatprep.subr.mxu0 0.0
    %1801 = vmatpush2.msra.mxu0 0.0
    %1802 = vmatprep.subr.mxu0 0.0
    %1803 = vmatpush2.msra.mxu0 0.0
    %1804 = vmatprep.subr.mxu0 0.0
    %1805 = vmatpush2.msra.mxu0 0.0
    %1806 = vmatprep.subr.mxu0 0.0
    %1807 = vmatpush2.msra.mxu0 0.0
    %1808 = vmatprep.subr.mxu0 0.0
    %1809 = vmatpush2.msra.mxu0 0.0
    %1810 = vmatprep.subr.mxu0 0.0
    %1811 = vmatpush2.msra.mxu0 0.0
    %1812 = vmatprep.subr.mxu0 0.0
    %1813 = vmatpush2.msra.mxu0 0.0
    %1814 = vmatprep.subr.mxu0 0.0
    %1815 = vmatpush2.msra.mxu0 0.0
    %1816 = vmatprep.subr.mxu0 0.0
    %1817 = vmatpush2.msra.mxu0 0.0
    %1818 = vmatprep.mubr.f32.mxu0 0.0
    %1819 = vmatmul.mubr.f32.gmra.mxu0 %v1749
    %v1820 = vpop.f32.mrf.mxu0
    %v1821 = vadd.f32 0.0, %v1820
    %v1822 = vpop.f32.mrf.mxu0
    %1823 = vmatprep.mubr.f32.mxu0 0.0
    %1824 = vmatmul.mubr.f32.gmra.mxu0 %v1752
    %v1825 = vpop.f32.mrf.mxu0
    %v1826 = vadd.f32 0.0, %v1825
    %v1827 = vpop.f32.mrf.mxu0
    %1828 = vdwg.mxu0
    %v1829 = vadd.f32 %v1416, %v1821
    %v1830 = vadd.f32 %v1417, %v1826
    %v1831 = vld [vmem:[%s5] sm:$0x1]
    %v1833 = vlaneseq
    %v1834 = vshrl.u32 %v1833, 7
    %v1835 = vsub.s32 0, %v1834
    %v1836 = vrot.slane %v1831, %v1835
    %v1838 = vadd.f32 %v1829, %v1836
    %v1839 = vadd.f32 %v1830, %v1836
    %v1840 = vadd.f32 %v1838, %v76
    %v1841 = vadd.f32 %v1839, %v77
    %v1842 = vld [vmem:[%s10] sm:$0x1]
    %v1843 = vld [vmem:[%s11] sm:$0x1]
    %v1844 = vsel %vm93, %v1840, 0.0
    %1845 = vadd.xlane.f32.xlu0 %v1844
    %v1846 = vpop.xlane.xlu0 %1845
    %v1847 = vsel %vm93, %v1841, 0.0
    %1848 = vadd.xlane.f32.xlu0 %v1847
    %v1849 = vpop.xlane.xlu0 %1848
    %v1850 = vrcp.pop 32.0
    %v1851 = vmul.f32 %v1846, %v1850
    %v1852 = vmul.f32 %v1849, %v1850
    %v1853 = vsub.f32 %v1840, %v1851
    %v1854 = vsub.f32 %v1841, %v1852
    %v1855 = vmul.f32 %v1853, %v1853
    %v1856 = vmul.f32 %v1854, %v1854
    %v1857 = vsel %vm93, %v1855, 0.0
    %1858 = vadd.xlane.f32.xlu0 %v1857
    %v1859 = vpop.xlane.xlu0 %1858
    %v1860 = vsel %vm93, %v1856, 0.0
    %1861 = vadd.xlane.f32.xlu0 %v1860
    %v1862 = vpop.xlane.xlu0 %1861
    %v1863 = vmul.f32 %v1859, %v1850
    %v1864 = vmul.f32 %v1862, %v1850
    %v1865 = vadd.f32 %v1863, 1e-05
    %v1866 = vadd.f32 %v1864, 1e-05
    %v1867 = vrsqrt.pop %v1865
    %v1868 = vrsqrt.pop %v1866
    %v1869 = vmul.f32 %v1853, %v1867
    %v1870 = vmul.f32 %v1854, %v1868
    %v1872 = vlaneseq
    %v1873 = vshrl.u32 %v1872, 7
    %v1874 = vsub.s32 0, %v1873
    %v1875 = vrot.slane %v1842, %v1874
    %v1877 = vmul.f32 %v1869, %v1875
    %v1878 = vmul.f32 %v1870, %v1875
    %v1880 = vlaneseq
    %v1881 = vshrl.u32 %v1880, 7
    %v1882 = vsub.s32 0, %v1881
    %v1883 = vrot.slane %v1843, %v1882
    %v1885 = vadd.f32 %v1877, %v1883
    %v1886 = vadd.f32 %v1878, %v1883
    %v1887 = vld [vmem:[%s6] sm:$0xff]
    %v1888 = vld [vmem:[%s6 + $0x8] sm:$0xff]
    %v1889 = vld [vmem:[%s6 + $0x10] sm:$0xff]
    %v1890 = vld [vmem:[%s6 + $0x18] sm:$0xff]
    %v1891 = vld [vmem:[%s7] sm:$0x1]
    %v1893 = vlaneseq
    %v1894 = vshrl.u32 %v1893, 7
    %v1895 = vsub.s32 0, %v1894
    %v1896 = vrot.slane %v1891, %v1895
    %v1899 = vsel %vm93, %v1885, 0
    %v1902 = vsel %vm93, %v1886, 0
    %1904 = vmatprep.subr.mxu0 0.0
    %1905 = vmatpush1.msra.mxu0 0.0
    %1906 = vmatprep.subr.mxu0 0.0
    %1907 = vmatpush1.msra.mxu0 0.0
    %1908 = vmatprep.subr.mxu0 0.0
    %1909 = vmatpush1.msra.mxu0 0.0
    %1910 = vmatprep.subr.mxu0 0.0
    %1911 = vmatpush1.msra.mxu0 0.0
    %1912 = vmatprep.subr.mxu0 0.0
    %1913 = vmatpush1.msra.mxu0 0.0
    %1914 = vmatprep.subr.mxu0 0.0
    %1915 = vmatpush1.msra.mxu0 0.0
    %1916 = vmatprep.subr.mxu0 0.0
    %1917 = vmatpush1.msra.mxu0 0.0
    %1918 = vmatprep.subr.mxu0 0.0
    %1919 = vmatpush1.msra.mxu0 0.0
    %1920 = vmatprep.subr.mxu0 0.0
    %1921 = vmatpush1.msra.mxu0 0.0
    %1922 = vmatprep.subr.mxu0 0.0
    %1923 = vmatpush1.msra.mxu0 0.0
    %1924 = vmatprep.subr.mxu0 0.0
    %1925 = vmatpush1.msra.mxu0 0.0
    %1926 = vmatprep.subr.mxu0 0.0
    %1927 = vmatpush1.msra.mxu0 0.0
    %1928 = vmatprep.subr.mxu0 0.0
    %1929 = vmatpush1.msra.mxu0 %v1890
    %1930 = vmatprep.subr.mxu0 0.0
    %1931 = vmatpush1.msra.mxu0 %v1889
    %1932 = vmatprep.subr.mxu0 0.0
    %1933 = vmatpush1.msra.mxu0 %v1888
    %1934 = vmatprep.subr.mxu0 0.0
    %1935 = vmatpush1.msra.mxu0 %v1887
    %1936 = vmatprep.subr.mxu0 0.0
    %1937 = vmatpush2.msra.mxu0 0.0
    %1938 = vmatprep.subr.mxu0 0.0
    %1939 = vmatpush2.msra.mxu0 0.0
    %1940 = vmatprep.subr.mxu0 0.0
    %1941 = vmatpush2.msra.mxu0 0.0
    %1942 = vmatprep.subr.mxu0 0.0
    %1943 = vmatpush2.msra.mxu0 0.0
    %1944 = vmatprep.subr.mxu0 0.0
    %1945 = vmatpush2.msra.mxu0 0.0
    %1946 = vmatprep.subr.mxu0 0.0
    %1947 = vmatpush2.msra.mxu0 0.0
    %1948 = vmatprep.subr.mxu0 0.0
    %1949 = vmatpush2.msra.mxu0 0.0
    %1950 = vmatprep.subr.mxu0 0.0
    %1951 = vmatpush2.msra.mxu0 0.0
    %1952 = vmatprep.subr.mxu0 0.0
    %1953 = vmatpush2.msra.mxu0 0.0
    %1954 = vmatprep.subr.mxu0 0.0
    %1955 = vmatpush2.msra.mxu0 0.0
    %1956 = vmatprep.subr.mxu0 0.0
    %1957 = vmatpush2.msra.mxu0 0.0
    %1958 = vmatprep.subr.mxu0 0.0
    %1959 = vmatpush2.msra.mxu0 0.0
    %1960 = vmatprep.subr.mxu0 0.0
    %1961 = vmatpush2.msra.mxu0 0.0
    %1962 = vmatprep.subr.mxu0 0.0
    %1963 = vmatpush2.msra.mxu0 0.0
    %1964 = vmatprep.subr.mxu0 0.0
    %1965 = vmatpush2.msra.mxu0 0.0
    %1966 = vmatprep.subr.mxu0 0.0
    %1967 = vmatpush2.msra.mxu0 0.0
    %1968 = vmatprep.mubr.f32.mxu0 0.0
    %1969 = vmatmul.mubr.f32.gmra.mxu0 %v1899
    %v1970 = vpop.f32.mrf.mxu0
    %v1971 = vadd.f32 %v1896, %v1970
    %v1972 = vpop.f32.mrf.mxu0
    %1973 = vmatprep.mubr.f32.mxu0 0.0
    %1974 = vmatmul.mubr.f32.gmra.mxu0 %v1902
    %v1975 = vpop.f32.mrf.mxu0
    %v1976 = vadd.f32 %v1896, %v1975
    %v1977 = vpop.f32.mrf.mxu0
    %1978 = vdwg.mxu0
    %v1979 = vmax.f32 %v1971, 0.0
    %v1980 = vmax.f32 %v1976, 0.0
    %v1981 = vld [vmem:[%s8] sm:$0xff]
    %v1982 = vld [vmem:[%s8 + $0x8] sm:$0xff]
    %v1983 = vld [vmem:[%s8 + $0x10] sm:$0xff]
    %v1984 = vld [vmem:[%s8 + $0x18] sm:$0xff]
    %v1985 = vld [vmem:[%s8 + $0x20] sm:$0xff]
    %v1986 = vld [vmem:[%s8 + $0x28] sm:$0xff]
    %v1987 = vld [vmem:[%s8 + $0x30] sm:$0xff]
    %v1988 = vld [vmem:[%s8 + $0x38] sm:$0xff]
    %v1989 = vld [vmem:[%s9] sm:$0x1]
    %v1991 = vlaneseq
    %v1992 = vshrl.u32 %v1991, 7
    %v1993 = vsub.s32 0, %v1992
    %v1994 = vrot.slane %v1989, %v1993
    %vm1996 = vcmask 523264
    %v1998 = vsel %vm1996, %v1979, 0
    %v2001 = vsel %vm1996, %v1980, 0
    %2003 = vmatprep.subr.mxu0 0.0
    %2004 = vmatpush1.msra.mxu0 0.0
    %2005 = vmatprep.subr.mxu0 0.0
    %2006 = vmatpush1.msra.mxu0 0.0
    %2007 = vmatprep.subr.mxu0 0.0
    %2008 = vmatpush1.msra.mxu0 0.0
    %2009 = vmatprep.subr.mxu0 0.0
    %2010 = vmatpush1.msra.mxu0 0.0
    %2011 = vmatprep.subr.mxu0 0.0
    %2012 = vmatpush1.msra.mxu0 0.0
    %2013 = vmatprep.subr.mxu0 0.0
    %2014 = vmatpush1.msra.mxu0 0.0
    %2015 = vmatprep.subr.mxu0 0.0
    %2016 = vmatpush1.msra.mxu0 0.0
    %2017 = vmatprep.subr.mxu0 0.0
    %2018 = vmatpush1.msra.mxu0 0.0
    %2019 = vmatprep.subr.mxu0 0.0
    %2020 = vmatpush1.msra.mxu0 %v1988
    %2021 = vmatprep.subr.mxu0 0.0
    %2022 = vmatpush1.msra.mxu0 %v1987
    %2023 = vmatprep.subr.mxu0 0.0
    %2024 = vmatpush1.msra.mxu0 %v1986
    %2025 = vmatprep.subr.mxu0 0.0
    %2026 = vmatpush1.msra.mxu0 %v1985
    %2027 = vmatprep.subr.mxu0 0.0
    %2028 = vmatpush1.msra.mxu0 %v1984
    %2029 = vmatprep.subr.mxu0 0.0
    %2030 = vmatpush1.msra.mxu0 %v1983
    %2031 = vmatprep.subr.mxu0 0.0
    %2032 = vmatpush1.msra.mxu0 %v1982
    %2033 = vmatprep.subr.mxu0 0.0
    %2034 = vmatpush1.msra.mxu0 %v1981
    %2035 = vmatprep.subr.mxu0 0.0
    %2036 = vmatpush2.msra.mxu0 0.0
    %2037 = vmatprep.subr.mxu0 0.0
    %2038 = vmatpush2.msra.mxu0 0.0
    %2039 = vmatprep.subr.mxu0 0.0
    %2040 = vmatpush2.msra.mxu0 0.0
    %2041 = vmatprep.subr.mxu0 0.0
    %2042 = vmatpush2.msra.mxu0 0.0
    %2043 = vmatprep.subr.mxu0 0.0
    %2044 = vmatpush2.msra.mxu0 0.0
    %2045 = vmatprep.subr.mxu0 0.0
    %2046 = vmatpush2.msra.mxu0 0.0
    %2047 = vmatprep.subr.mxu0 0.0
    %2048 = vmatpush2.msra.mxu0 0.0
    %2049 = vmatprep.subr.mxu0 0.0
    %2050 = vmatpush2.msra.mxu0 0.0
    %2051 = vmatprep.subr.mxu0 0.0
    %2052 = vmatpush2.msra.mxu0 0.0
    %2053 = vmatprep.subr.mxu0 0.0
    %2054 = vmatpush2.msra.mxu0 0.0
    %2055 = vmatprep.subr.mxu0 0.0
    %2056 = vmatpush2.msra.mxu0 0.0
    %2057 = vmatprep.subr.mxu0 0.0
    %2058 = vmatpush2.msra.mxu0 0.0
    %2059 = vmatprep.subr.mxu0 0.0
    %2060 = vmatpush2.msra.mxu0 0.0
    %2061 = vmatprep.subr.mxu0 0.0
    %2062 = vmatpush2.msra.mxu0 0.0
    %2063 = vmatprep.subr.mxu0 0.0
    %2064 = vmatpush2.msra.mxu0 0.0
    %2065 = vmatprep.subr.mxu0 0.0
    %2066 = vmatpush2.msra.mxu0 0.0
    %2067 = vmatprep.mubr.f32.mxu0 0.0
    %2068 = vmatmul.mubr.f32.gmra.mxu0 %v1998
    %v2069 = vpop.f32.mrf.mxu0
    %v2070 = vadd.f32 %v1994, %v2069
    %v2071 = vpop.f32.mrf.mxu0
    %2072 = vmatprep.mubr.f32.mxu0 0.0
    %2073 = vmatmul.mubr.f32.gmra.mxu0 %v2001
    %v2074 = vpop.f32.mrf.mxu0
    %v2075 = vadd.f32 %v1994, %v2074
    %v2076 = vpop.f32.mrf.mxu0
    %2077 = vdwg.mxu0
    %v2078 = vadd.f32 %v2070, %v1885
    %v2079 = vadd.f32 %v2075, %v1886
    %v2080 = vld [vmem:[%s12] sm:$0x1]
    %v2081 = vld [vmem:[%s13] sm:$0x1]
    %v2082 = vsel %vm93, %v2078, 0.0
    %2083 = vadd.xlane.f32.xlu0 %v2082
    %v2084 = vpop.xlane.xlu0 %2083
    %v2085 = vsel %vm93, %v2079, 0.0
    %2086 = vadd.xlane.f32.xlu0 %v2085
    %v2087 = vpop.xlane.xlu0 %2086
    %v2088 = vmul.f32 %v2084, %v1850
    %v2089 = vmul.f32 %v2087, %v1850
    %v2090 = vsub.f32 %v2078, %v2088
    %v2091 = vsub.f32 %v2079, %v2089
    %v2092 = vmul.f32 %v2090, %v2090
    %v2093 = vmul.f32 %v2091, %v2091
    %v2094 = vsel %vm93, %v2092, 0.0
    %2095 = vadd.xlane.f32.xlu0 %v2094
    %v2096 = vpop.xlane.xlu0 %2095
    %v2097 = vsel %vm93, %v2093, 0.0
    %2098 = vadd.xlane.f32.xlu0 %v2097
    %v2099 = vpop.xlane.xlu0 %2098
    %v2100 = vmul.f32 %v2096, %v1850
    %v2101 = vmul.f32 %v2099, %v1850
    %v2102 = vadd.f32 %v2100, 1e-05
    %v2103 = vadd.f32 %v2101, 1e-05
    %v2104 = vrsqrt.pop %v2102
    %v2105 = vrsqrt.pop %v2103
    %v2106 = vmul.f32 %v2090, %v2104
    %v2107 = vmul.f32 %v2091, %v2105
    %v2109 = vlaneseq
    %v2110 = vshrl.u32 %v2109, 7
    %v2111 = vsub.s32 0, %v2110
    %v2112 = vrot.slane %v2080, %v2111
    %v2114 = vmul.f32 %v2106, %v2112
    %v2115 = vmul.f32 %v2107, %v2112
    %v2117 = vlaneseq
    %v2118 = vshrl.u32 %v2117, 7
    %v2119 = vsub.s32 0, %v2118
    %v2120 = vrot.slane %v2081, %v2119
    %v2122 = vadd.f32 %v2114, %v2120
    %v2123 = vadd.f32 %v2115, %v2120
    %2124 = vst.msk [vmem:[#allocation7] sm:$0xff] %vm93, %v2122
    %2125 = vst.msk [vmem:[#allocation7 + $0x8] sm:$0xff] %vm93, %v2123
    // Predicated region
    $region66: #{tpu_custom_call.1} parent=1 // pred_check
      _
    $region67: #{tpu_custom_call.1} parent=1 // pred_check_branch
      %2127 = sbr.rel (0) target = $region69
    $region68: #{tpu_custom_call.1} parent=1 // pred_region
      %s2129 = ssub.s32 256, 256
      %2130 = vsyncadd [#allocation4], %s2129
      %s2131 = sshll.u32 [#allocation7], 4
      %s2132 = int_to_ptr.vmem [resolvable:$true] %s2131
      %2137 = dma.vmem_to_hbm [thread:$0]  %s2132, 256, %s14, [#allocation4], 128, 128, 8
    $region69: #{tpu_custom_call.1} parent=1 // pred_fallthru
      _
    // Predicated region
    $region70: #{tpu_custom_call.1} parent=1 // pred_check
      _
    $region71: #{tpu_custom_call.1} parent=1 // pred_check_branch
      %2139 = sbr.rel (0) target = $region73
    $region72: #{tpu_custom_call.1} parent=1 // pred_region
      %2140 = dma.done [#allocation4], 256
    $region73: #{tpu_custom_call.1} parent=1 // pred_fallthru
      _
    %2141 = vsyncpa [#allocation3], 1
    %2142 = vsyncpa [#allocation6], 1
    %2143 = vsyncpa [#allocation4], 1

</llo_original>
